<compile_context>
chip_gen: v6e
topology: v6e:2x2x1
jax: 0.10.0
libtpu: 0.0.40
codegen_flags: <defaults>
</compile_context>

<pallas_src>
import functools

import jax
import jax.numpy as jnp
from jax import lax
from jax.experimental import pallas as pl
from jax.experimental.pallas import tpu as pltpu


# ----------------------------- kernel helpers -------------------------------

def _rmsnorm(x, gamma, eps):
    # x: (rows, H) f32, gamma: (1, H) f32
    var = jnp.mean(x * x, axis=-1, keepdims=True)
    return x * lax.rsqrt(var + eps) * gamma


def _vmem_limit_bytes(batch_tile, L, H, num_heads, head_dim, causal):
    bf16, f32 = 2, 4
    rows = batch_tile * L
    nhd = num_heads * head_dim
    # streamed per-layer weight blocks (bf16) + RMSNorm gammas (f32)
    weights = (3 * nhd * H + nhd * H + 8 * H * H) * bf16 + 2 * H * f32
    acts = rows * H * f32
    temps = (3 * nhd * rows                        # qkv (feature-major)
             + 2 * batch_tile * num_heads * L * L  # scores + probs
             + rows * 4 * H                        # MLP hidden
             + 2 * rows * H) * f32                 # residual / projection temps
    mask = L * L * f32 if causal else 0
    need = 2 * weights + 3 * acts + 2 * temps + mask + (8 << 20)
    # >= 32 MiB keeps compile headroom at tiny debug shapes and is valid on all
    # generations; <= 96 MiB suits v5e/v6e (128 MiB).  On v7x (64 MiB physical)
    # lower the cap to ~56 MiB and tile w1/w2 along the FFN dim at realistic H.
    return int(min(max(need, 32 << 20), 96 << 20))


# ----------------------- fused stack of TransformerBlocks -------------------

def fused_blocks_kernel(x_ref, ga_ref, wqkv_ref, wo_ref, gm_ref, w1_ref, w2_ref,
                        o_ref, *scratch,
                        num_heads, head_dim, eps, causal, compute_dtype,
                        approx_reciprocal):
    layer = pl.program_id(1)

    # Layer 0 of each batch tile: seed the VMEM-resident activation.  The output
    # BlockSpec returns the same block index across the whole layer axis, so this
    # tile never round-trips to HBM between layers.
    @pl.when(layer == 0)
    def _():
        o_ref[...] = x_ref[...]

    BT, L, H = o_ref.shape
    NH, Hd = num_heads, head_dim
    NHd = NH * Hd
    rows = BT * L

    if causal:
        mask_ref = scratch[0]

        @pl.when(layer == 0)
        def _():
            row = lax.broadcasted_iota(jnp.int32, (L, L), 0)
            col = lax.broadcasted_iota(jnp.int32, (L, L), 1)
            mask_ref[...] = jnp.where(col > row, jnp.float32(-1e30),
                                      jnp.float32(0.0))

    x2d = o_ref[...].reshape(rows, H)          # (rows, H) f32, layer-resident
    g_attn = ga_ref[0]                         # (1, H)
    g_mlp = gm_ref[0]                          # (1, H)

    # --------------- attention sublayer: x + Wo( SDPA(heads(Wqkv h)) ) ------
    h = _rmsnorm(x2d, g_attn, eps)
    # Feature-major ("transposed") layout: the head split then lands on the
    # sublane axis (free reshape, head_dim % 8 == 0) instead of the lane axis.
    hT = h.T.astype(compute_dtype)                                # (H, rows)
    qkvT = jnp.dot(wqkv_ref[0], hT,
                   preferred_element_type=jnp.float32)            # (3*NHd, rows)

    scale = jnp.float32(Hd ** -0.5)
    qT = qkvT[0 * NHd:1 * NHd, :] * scale       # scale folded into q, not scores
    kT = qkvT[1 * NHd:2 * NHd, :]
    vT = qkvT[2 * NHd:3 * NHd, :]

    def to_heads(tT):
        # (NHd, rows) -> (NH, Hd, rows): free sublane split.  swapaxes(-1,-2) is
        # a supported batched minor-dims (XLU) transpose.  Splitting rows into
        # (BT, L) and merging (NH, BT) into one batch axis are free reshapes.
        t = jnp.swapaxes(tT.reshape(NH, Hd, rows), -1, -2)        # (NH, rows, Hd)
        return t.reshape(NH * BT, L, Hd).astype(compute_dtype)

    qh = to_heads(qT)                           # (NH*BT, L, Hd)
    kh = to_heads(kT)
    vh = to_heads(vT)

    s = jnp.einsum('gld,gmd->glm', qh, kh,
                   preferred_element_type=jnp.float32)            # (NH*BT, L, L)
    if causal:
        s = s + mask_ref[...][None, :, :]
    # TODO(synk): arbitrary dense attn_mask tensors (the Optional[mask] arg of
    # the PyTorch module) are not plumbed through; only None / causal supported.

    m = jnp.max(s, axis=-1, keepdims=True)
    p = jnp.exp(s - m)
    denom = jnp.sum(p, axis=-1, keepdims=True)
    p = p * pl.reciprocal(denom, approx=approx_reciprocal)        # EUP slot

    ob = jnp.einsum('glm,gmd->gld', p.astype(compute_dtype), vh,
                    preferred_element_type=jnp.float32)           # (NH*BT, L, Hd)

    # Fused per-head output projection (no concat of heads back to (rows, NHd)).
    ob_r = ob.reshape(NH, rows, Hd).astype(compute_dtype)         # free reshape
    proj = jnp.einsum('nrd,ndh->nrh', ob_r, wo_ref[0],
                      preferred_element_type=jnp.float32)         # (NH, rows, H)
    x2d = x2d + jnp.sum(proj, axis=0)

    # --------------- MLP sublayer: x + W2( SiLU( W1 RMSNorm(x) ) ) ----------
    h2 = _rmsnorm(x2d, g_mlp, eps).astype(compute_dtype)
    u = jnp.dot(h2, w1_ref[0], preferred_element_type=jnp.float32)   # (rows, 4H)
    u = u * jax.nn.sigmoid(u)                                        # SiLU, f32
    x2d = x2d + jnp.dot(u.astype(compute_dtype), w2_ref[0],
                        preferred_element_type=jnp.float32)

    o_ref[...] = x2d.reshape(BT, L, H)


def transformer_blocks_forward(x, params, *, num_heads, head_dim, eps,
                               causal=False, compute_dtype=jnp.bfloat16,
                               batch_tile=None, approx_reciprocal=True):
    """Applies the whole stack of TransformerBlocks in one fused pallas_call."""
    B, L, H = x.shape
    num_layers = params['wq'].shape[0]
    if batch_tile is None:
        batch_tile = B          # max rows per weight DMA (weight-stream bound fix)
    assert B % batch_tile == 0, "batch must be divisible by batch_tile"
    assert L % 8 == 0 and head_dim % 8 == 0, (
        "kernel assumes sublane-aligned seq length and head_dim (multiples of 8)")
    nbt = B // batch_tile

    # Fused, pre-transposed QKV weight (3*NH*Hd, H) and per-head output weight.
    wqkv_t = jnp.concatenate(
        [jnp.swapaxes(params['wq'], 1, 2),
         jnp.swapaxes(params['wk'], 1, 2),
         jnp.swapaxes(params['wv'], 1, 2)], axis=1)               # (NL, 3*NHd, H)
    wo_heads = params['wo'].reshape(num_layers, num_heads, head_dim, H)

    kernel = functools.partial(
        fused_blocks_kernel,
        num_heads=num_heads, head_dim=head_dim, eps=eps, causal=causal,
        compute_dtype=compute_dtype, approx_reciprocal=approx_reciprocal)

    act_spec = pl.BlockSpec((batch_tile, L, H), lambda b, l: (b, 0, 0))

    def layer_spec(arr):
        zeros = (0,) * (arr.ndim - 1)
        return pl.BlockSpec((1,) + arr.shape[1:],
                            lambda b, l, _z=zeros: (l,) + _z)

    scratch_shapes = [pltpu.VMEM((L, L), jnp.float32)] if causal else []
    vmem_limit = _vmem_limit_bytes(batch_tile, L, H, num_heads, head_dim, causal)

    return pl.pallas_call(
        kernel,
        out_shape=jax.ShapeDtypeStruct((B, L, H), jnp.float32),
        grid=(nbt, num_layers),
        in_specs=[
            act_spec,                     # x (read only at layer 0)
            layer_spec(params['g_attn']),
            layer_spec(wqkv_t),
            layer_spec(wo_heads),
            layer_spec(params['g_mlp']),
            layer_spec(params['w1']),
            layer_spec(params['w2']),
        ],
        out_specs=act_spec,
        scratch_shapes=scratch_shapes,
        compiler_params=pltpu.CompilerParams(
            dimension_semantics=("parallel", "arbitrary"),
            vmem_limit_bytes=vmem_limit),
    )(x, params['g_attn'], wqkv_t, wo_heads, params['g_mlp'],
      params['w1'], params['w2'])


# ------------------------- pure-JAX reference (same math) -------------------

def transformer_blocks_reference(x, params, *, num_heads, head_dim, eps,
                                 causal=False, compute_dtype=jnp.bfloat16):
    B, L, H = x.shape
    num_layers = params['wq'].shape[0]
    scale = head_dim ** -0.5

    def rms(t, g):
        var = jnp.mean(t * t, axis=-1, keepdims=True)
        return t * lax.rsqrt(var + eps) * g

    for li in range(num_layers):
        h = rms(x, params['g_attn'][li]).astype(compute_dtype)
        q = jnp.dot(h, params['wq'][li], preferred_element_type=jnp.float32) * scale
        k = jnp.dot(h, params['wk'][li], preferred_element_type=jnp.float32)
        v = jnp.dot(h, params['wv'][li], preferred_element_type=jnp.float32)

        def heads(t):
            return t.reshape(B, L, num_heads, head_dim).transpose(0, 2, 1, 3)

        qh = heads(q).astype(compute_dtype)
        kh = heads(k).astype(compute_dtype)
        vh = heads(v).astype(compute_dtype)
        s = jnp.einsum('bnld,bnmd->bnlm', qh, kh,
                       preferred_element_type=jnp.float32)
        if causal:
            row = lax.broadcasted_iota(jnp.int32, (L, L), 0)
            col = lax.broadcasted_iota(jnp.int32, (L, L), 1)
            s = jnp.where((col > row)[None, None], jnp.float32(-1e30), s)
        p = jax.nn.softmax(s, axis=-1)
        attn = jnp.einsum('bnlm,bnmd->bnld', p.astype(compute_dtype), vh,
                          preferred_element_type=jnp.float32)
        attn2d = attn.transpose(0, 2, 1, 3).reshape(B, L, num_heads * head_dim)
        x = x + jnp.dot(attn2d.astype(compute_dtype), params['wo'][li],
                        preferred_element_type=jnp.float32)

        h2 = rms(x, params['g_mlp'][li]).astype(compute_dtype)
        u = jnp.dot(h2, params['w1'][li], preferred_element_type=jnp.float32)
        u = u * jax.nn.sigmoid(u)
        x = x + jnp.dot(u.astype(compute_dtype), params['w2'][li],
                        preferred_element_type=jnp.float32)
    return x


# --------------------------- parameter creation -----------------------------

def init_params(key, num_layers, hidden_size, num_heads, head_dim):
    H = hidden_size
    NHd = num_heads * head_dim
    ks = jax.random.split(key, 6)

    def w(k, shape):
        return (jax.random.normal(k, shape, jnp.float32) * 0.02).astype(jnp.bfloat16)

    return dict(
        g_attn=jnp.ones((num_layers, 1, H), jnp.float32),
        g_mlp=jnp.ones((num_layers, 1, H), jnp.float32),
        wq=w(ks[0], (num_layers, H, NHd)),     # nn.Linear weights, pre-transposed
        wk=w(ks[1], (num_layers, H, NHd)),
        wv=w(ks[2], (num_layers, H, NHd)),
        wo=w(ks[3], (num_layers, NHd, H)),
        w1=w(ks[4], (num_layers, H, 4 * H)),
        w2=w(ks[5], (num_layers, 4 * H, H)),
    )


# ---------------------------------- main -------------------------------------

if __name__ == "__main__":
    B, L = 2, 8
    hidden_size, num_heads, head_dim = 32, 4, 8
    num_layers = 2
    rms_norm_eps = 1e-6
    # attention_dropout / mlp_dropout = 0.0 (eval mode) -> dropout is identity.

    key = jax.random.PRNGKey(0)
    xk, pk = jax.random.split(key)
    x = jax.random.normal(xk, (B, L, hidden_size), jnp.float32)
    params = init_params(pk, num_layers, hidden_size, num_heads, head_dim)

    ref = transformer_blocks_reference(
        x, params, num_heads=num_heads, head_dim=head_dim,
        eps=rms_norm_eps, causal=False)
    ref = jax.block_until_ready(ref)

    # Default: batch_tile = B -> every layer's weights are streamed exactly once.
    out = transformer_blocks_forward(
        x, params, num_heads=num_heads, head_dim=head_dim,
        eps=rms_norm_eps, causal=False)
    out = jax.block_until_ready(out)
    assert out.shape == (B, L, hidden_size)
    assert bool(jnp.all(jnp.isfinite(out)))
    err = float(jnp.max(jnp.abs(out - ref)))
    assert err < 3e-2, f"mismatch vs reference (batch_tile=B): {err}"

    # Also exercise the multi-tile path (parallel grid axis, e.g. for v7x 2 TCs).
    out2 = transformer_blocks_forward(
        x, params, num_heads=num_heads, head_dim=head_dim,
        eps=rms_norm_eps, causal=False, batch_tile=1)
    out2 = jax.block_until_ready(out2)
    err2 = float(jnp.max(jnp.abs(out2 - ref)))
    assert err2 < 3e-2, f"mismatch vs reference (batch_tile=1): {err2}"

    print("KERNEL_OK")
</pallas_src>

<mosaic_0001>
module attributes {stable_mosaic.version = 11 : i64} {
  func.func @fused_blocks_kernel(%arg0: i32, %arg1: i32, %arg2: memref<2x8x32xf32, #tpu.memory_space<vmem>>, %arg3: memref<1x1x32xf32, #tpu.memory_space<vmem>>, %arg4: memref<1x96x32xbf16, #tpu.memory_space<vmem>>, %arg5: memref<1x4x8x32xbf16, #tpu.memory_space<vmem>>, %arg6: memref<1x1x32xf32, #tpu.memory_space<vmem>>, %arg7: memref<1x32x128xbf16, #tpu.memory_space<vmem>>, %arg8: memref<1x128x32xbf16, #tpu.memory_space<vmem>>, %arg9: memref<2x8x32xf32, #tpu.memory_space<vmem>>) attributes {dimension_semantics = [#tpu.dimension_semantics<parallel>, #tpu.dimension_semantics<arbitrary>], iteration_bounds = array<i64: 1, 2>, scalar_prefetch = 0 : i64, scratch_operands = 0 : i64, tpu.core_type = #tpu.core_type<tc>, window_params = [{transform_indices = @transform_0, window_bounds = array<i64: 2, 8, 32>}, {transform_indices = @transform_1, window_bounds = array<i64: 1, 1, 32>}, {transform_indices = @transform_2, window_bounds = array<i64: 1, 96, 32>}, {transform_indices = @transform_3, window_bounds = array<i64: 1, 4, 8, 32>}, {transform_indices = @transform_4, window_bounds = array<i64: 1, 1, 32>}, {transform_indices = @transform_5, window_bounds = array<i64: 1, 32, 128>}, {transform_indices = @transform_6, window_bounds = array<i64: 1, 128, 32>}, {transform_indices = @transform_7, window_bounds = array<i64: 2, 8, 32>}]} {
    %c0_i32 = arith.constant 0 : i32
    %0 = arith.cmpi eq, %arg1, %c0_i32 : i32
    %1 = arith.extui %0 : i1 to i32
    %c0_i32_0 = arith.constant 0 : i32
    %2 = arith.cmpi ne, %1, %c0_i32_0 : i32
    scf.if %2 {
      %c0_41 = arith.constant 0 : index
      %c0_42 = arith.constant 0 : index
      %c0_43 = arith.constant 0 : index
      %92 = vector.load %arg2[%c0_41, %c0_42, %c0_43] : memref<2x8x32xf32, #tpu.memory_space<vmem>>, vector<2x8x32xf32>
      %c0_44 = arith.constant 0 : index
      %c0_45 = arith.constant 0 : index
      %c0_46 = arith.constant 0 : index
      %93 = vector.load %arg9[%c0_44, %c0_45, %c0_46] : memref<2x8x32xf32, #tpu.memory_space<vmem>>, vector<2x8x32xf32>
      tpu.vector_store %arg9[%c0_44, %c0_45, %c0_46], %92 {strides = array<i32>} : memref<2x8x32xf32, #tpu.memory_space<vmem>>, vector<2x8x32xf32>,
    } else {
    }
    %c0 = arith.constant 0 : index
    %c0_1 = arith.constant 0 : index
    %c0_2 = arith.constant 0 : index
    %3 = vector.load %arg9[%c0, %c0_1, %c0_2] : memref<2x8x32xf32, #tpu.memory_space<vmem>>, vector<2x8x32xf32>
    %4 = vector.shape_cast %3 : vector<2x8x32xf32> to vector<16x32xf32>
    %c0_3 = arith.constant 0 : index
    %c0_4 = arith.constant 0 : index
    %c0_5 = arith.constant 0 : index
    %5 = vector.load %arg3[%c0_3, %c0_4, %c0_5] : memref<1x1x32xf32, #tpu.memory_space<vmem>>, vector<1x1x32xf32>
    %6 = vector.shape_cast %5 : vector<1x1x32xf32> to vector<1x32xf32>
    %c0_6 = arith.constant 0 : index
    %c0_7 = arith.constant 0 : index
    %c0_8 = arith.constant 0 : index
    %7 = vector.load %arg6[%c0_6, %c0_7, %c0_8] : memref<1x1x32xf32, #tpu.memory_space<vmem>>, vector<1x1x32xf32>
    %8 = vector.shape_cast %7 : vector<1x1x32xf32> to vector<1x32xf32>
    %9 = arith.mulf %4, %4 : vector<16x32xf32>
    %cst = arith.constant dense<0.000000e+00> : vector<16xf32>
    %10 = vector.multi_reduction <add>, %9, %cst [1] : vector<16x32xf32> to vector<16xf32>
    %11 = vector.shape_cast %10 : vector<16xf32> to vector<16x1xf32>
    %cst_9 = arith.constant 3.200000e+01 : f32
    %12 = vector.broadcast %cst_9 : f32 to vector<16x1xf32>
    %13 = arith.divf %11, %12 : vector<16x1xf32>
    %cst_10 = arith.constant 9.99999997E-7 : f32
    %14 = vector.broadcast %cst_10 : f32 to vector<16x1xf32>
    %15 = arith.addf %13, %14 : vector<16x1xf32>
    %16 = math.rsqrt %15 : vector<16x1xf32>
    %17 = vector.broadcast %16 : vector<16x1xf32> to vector<16x32xf32>
    %18 = arith.mulf %4, %17 : vector<16x32xf32>
    %19 = vector.broadcast %6 : vector<1x32xf32> to vector<16x32xf32>
    %20 = arith.mulf %18, %19 : vector<16x32xf32>
    %21 = tpu.transpose %20, [1, 0] : vector<16x32xf32> -> vector<32x16xf32>
    %22 = arith.truncf %21 : vector<32x16xf32> to vector<32x16xbf16>
    %c0_11 = arith.constant 0 : index
    %c0_12 = arith.constant 0 : index
    %c0_13 = arith.constant 0 : index
    %23 = vector.load %arg4[%c0_11, %c0_12, %c0_13] : memref<1x96x32xbf16, #tpu.memory_space<vmem>>, vector<1x96x32xbf16>
    %24 = vector.shape_cast %23 : vector<1x96x32xbf16> to vector<96x32xbf16>
    %cst_14 = arith.constant dense<0.000000e+00> : vector<96x16xf32>
    %25 = tpu.matmul %24, %22, %cst_14 {dimension_numbers = #tpu.dot_dimension_numbers<[1], [0], [0], [1], [0, 0, 1, 1], [], []>} : vector<96x32xbf16>, vector<32x16xbf16>, vector<96x16xf32> -> vector<96x16xf32>
    %26 = vector.extract_strided_slice %25 {offsets = [0, 0], sizes = [32, 16], strides = [1, 1]} : vector<96x16xf32> to vector<32x16xf32>
    %cst_15 = arith.constant 0.353553385 : f32
    %27 = vector.broadcast %cst_15 : f32 to vector<32x16xf32>
    %28 = arith.mulf %26, %27 : vector<32x16xf32>
    %29 = vector.extract_strided_slice %25 {offsets = [32, 0], sizes = [32, 16], strides = [1, 1]} : vector<96x16xf32> to vector<32x16xf32>
    %30 = vector.extract_strided_slice %25 {offsets = [64, 0], sizes = [32, 16], strides = [1, 1]} : vector<96x16xf32> to vector<32x16xf32>
    %31 = vector.shape_cast %28 : vector<32x16xf32> to vector<4x8x16xf32>
    %32 = tpu.transpose %31, [0, 2, 1] : vector<4x8x16xf32> -> vector<4x16x8xf32>
    %33 = vector.shape_cast %32 : vector<4x16x8xf32> to vector<8x8x8xf32>
    %34 = arith.truncf %33 : vector<8x8x8xf32> to vector<8x8x8xbf16>
    %35 = vector.shape_cast %29 : vector<32x16xf32> to vector<4x8x16xf32>
    %36 = tpu.transpose %35, [0, 2, 1] : vector<4x8x16xf32> -> vector<4x16x8xf32>
    %37 = vector.shape_cast %36 : vector<4x16x8xf32> to vector<8x8x8xf32>
    %38 = arith.truncf %37 : vector<8x8x8xf32> to vector<8x8x8xbf16>
    %39 = vector.shape_cast %30 : vector<32x16xf32> to vector<4x8x16xf32>
    %40 = tpu.transpose %39, [0, 2, 1] : vector<4x8x16xf32> -> vector<4x16x8xf32>
    %41 = vector.shape_cast %40 : vector<4x16x8xf32> to vector<8x8x8xf32>
    %42 = arith.truncf %41 : vector<8x8x8xf32> to vector<8x8x8xbf16>
    "tpu.trace_start"() <{level = 10 : i32, message = "gld,gmd->glm"}> : () -> ()
    %cst_16 = arith.constant dense<0.000000e+00> : vector<8x8x8xf32>
    %43 = tpu.matmul %34, %38, %cst_16 {dimension_numbers = #tpu.dot_dimension_numbers<[2], [2], [1], [1], [0, 0, 0, 1, 1, 1], [0], [0]>} : vector<8x8x8xbf16>, vector<8x8x8xbf16>, vector<8x8x8xf32> -> vector<8x8x8xf32>
    "tpu.trace_stop"() : () -> ()
    %cst_17 = arith.constant dense<0xFF800000> : vector<8x8xf32>
    %44 = vector.multi_reduction <maximumf>, %43, %cst_17 [2] : vector<8x8x8xf32> to vector<8x8xf32>
    %45 = vector.shape_cast %44 : vector<8x8xf32> to vector<8x8x1xf32>
    %46 = vector.broadcast %45 : vector<8x8x1xf32> to vector<8x8x8xf32>
    %47 = arith.subf %43, %46 : vector<8x8x8xf32>
    %48 = math.exp %47 : vector<8x8x8xf32>
    %cst_18 = arith.constant dense<0.000000e+00> : vector<8x8xf32>
    %49 = vector.multi_reduction <add>, %48, %cst_18 [2] : vector<8x8x8xf32> to vector<8x8xf32>
    %50 = vector.shape_cast %49 : vector<8x8xf32> to vector<8x8x1xf32>
    %51 = tpu.reciprocal %50 {approx = true} : vector<8x8x1xf32> -> vector<8x8x1xf32>
    %52 = vector.broadcast %51 : vector<8x8x1xf32> to vector<8x8x8xf32>
    %53 = arith.mulf %48, %52 : vector<8x8x8xf32>
    %54 = arith.truncf %53 : vector<8x8x8xf32> to vector<8x8x8xbf16>
    "tpu.trace_start"() <{level = 10 : i32, message = "glm,gmd->gld"}> : () -> ()
    %cst_19 = arith.constant dense<0.000000e+00> : vector<8x8x8xf32>
    %55 = tpu.matmul %54, %42, %cst_19 {dimension_numbers = #tpu.dot_dimension_numbers<[2], [1], [1], [2], [0, 0, 0, 1, 1, 2], [0], [0]>} : vector<8x8x8xbf16>, vector<8x8x8xbf16>, vector<8x8x8xf32> -> vector<8x8x8xf32>
    "tpu.trace_stop"() : () -> ()
    %56 = vector.shape_cast %55 : vector<8x8x8xf32> to vector<4x16x8xf32>
    %57 = arith.truncf %56 : vector<4x16x8xf32> to vector<4x16x8xbf16>
    %c0_20 = arith.constant 0 : index
    %c0_21 = arith.constant 0 : index
    %c0_22 = arith.constant 0 : index
    %c0_23 = arith.constant 0 : index
    %58 = vector.load %arg5[%c0_20, %c0_21, %c0_22, %c0_23] : memref<1x4x8x32xbf16, #tpu.memory_space<vmem>>, vector<1x4x8x32xbf16>
    %59 = vector.shape_cast %58 : vector<1x4x8x32xbf16> to vector<4x8x32xbf16>
    "tpu.trace_start"() <{level = 10 : i32, message = "nrd,ndh->nrh"}> : () -> ()
    %cst_24 = arith.constant dense<0.000000e+00> : vector<4x16x32xf32>
    %60 = tpu.matmul %57, %59, %cst_24 {dimension_numbers = #tpu.dot_dimension_numbers<[2], [1], [1], [2], [0, 0, 0, 1, 1, 2], [0], [0]>} : vector<4x16x8xbf16>, vector<4x8x32xbf16>, vector<4x16x32xf32> -> vector<4x16x32xf32>
    "tpu.trace_stop"() : () -> ()
    %cst_25 = arith.constant dense<0.000000e+00> : vector<16x32xf32>
    %61 = vector.multi_reduction <add>, %60, %cst_25 [0] : vector<4x16x32xf32> to vector<16x32xf32>
    %62 = arith.addf %4, %61 : vector<16x32xf32>
    %63 = arith.mulf %62, %62 : vector<16x32xf32>
    %cst_26 = arith.constant dense<0.000000e+00> : vector<16xf32>
    %64 = vector.multi_reduction <add>, %63, %cst_26 [1] : vector<16x32xf32> to vector<16xf32>
    %65 = vector.shape_cast %64 : vector<16xf32> to vector<16x1xf32>
    %cst_27 = arith.constant 3.200000e+01 : f32
    %66 = vector.broadcast %cst_27 : f32 to vector<16x1xf32>
    %67 = arith.divf %65, %66 : vector<16x1xf32>
    %cst_28 = arith.constant 9.99999997E-7 : f32
    %68 = vector.broadcast %cst_28 : f32 to vector<16x1xf32>
    %69 = arith.addf %67, %68 : vector<16x1xf32>
    %70 = math.rsqrt %69 : vector<16x1xf32>
    %71 = vector.broadcast %70 : vector<16x1xf32> to vector<16x32xf32>
    %72 = arith.mulf %62, %71 : vector<16x32xf32>
    %73 = vector.broadcast %8 : vector<1x32xf32> to vector<16x32xf32>
    %74 = arith.mulf %72, %73 : vector<16x32xf32>
    %75 = arith.truncf %74 : vector<16x32xf32> to vector<16x32xbf16>
    %c0_29 = arith.constant 0 : index
    %c0_30 = arith.constant 0 : index
    %c0_31 = arith.constant 0 : index
    %76 = vector.load %arg7[%c0_29, %c0_30, %c0_31] : memref<1x32x128xbf16, #tpu.memory_space<vmem>>, vector<1x32x128xbf16>
    %77 = vector.shape_cast %76 : vector<1x32x128xbf16> to vector<32x128xbf16>
    %cst_32 = arith.constant dense<0.000000e+00> : vector<16x128xf32>
    %78 = tpu.matmul %75, %77, %cst_32 {dimension_numbers = #tpu.dot_dimension_numbers<[1], [0], [0], [1], [0, 0, 1, 1], [], []>} : vector<16x32xbf16>, vector<32x128xbf16>, vector<16x128xf32> -> vector<16x128xf32>
    %79 = arith.negf %78 : vector<16x128xf32>
    %80 = math.exp %79 : vector<16x128xf32>
    %cst_33 = arith.constant 1.000000e+00 : f32
    %81 = vector.broadcast %cst_33 : f32 to vector<16x128xf32>
    %82 = arith.addf %81, %80 : vector<16x128xf32>
    %83 = arith.divf %81, %82 : vector<16x128xf32>
    %84 = arith.mulf %78, %83 : vector<16x128xf32>
    %85 = arith.truncf %84 : vector<16x128xf32> to vector<16x128xbf16>
    %c0_34 = arith.constant 0 : index
    %c0_35 = arith.constant 0 : index
    %c0_36 = arith.constant 0 : index
    %86 = vector.load %arg8[%c0_34, %c0_35, %c0_36] : memref<1x128x32xbf16, #tpu.memory_space<vmem>>, vector<1x128x32xbf16>
    %87 = vector.shape_cast %86 : vector<1x128x32xbf16> to vector<128x32xbf16>
    %cst_37 = arith.constant dense<0.000000e+00> : vector<16x32xf32>
    %88 = tpu.matmul %85, %87, %cst_37 {dimension_numbers = #tpu.dot_dimension_numbers<[1], [0], [0], [1], [0, 0, 1, 1], [], []>} : vector<16x128xbf16>, vector<128x32xbf16>, vector<16x32xf32> -> vector<16x32xf32>
    %89 = arith.addf %62, %88 : vector<16x32xf32>
    %90 = vector.shape_cast %89 : vector<16x32xf32> to vector<2x8x32xf32>
    %c0_38 = arith.constant 0 : index
    %c0_39 = arith.constant 0 : index
    %c0_40 = arith.constant 0 : index
    %91 = vector.load %arg9[%c0_38, %c0_39, %c0_40] : memref<2x8x32xf32, #tpu.memory_space<vmem>>, vector<2x8x32xf32>
    tpu.vector_store %arg9[%c0_38, %c0_39, %c0_40], %90 {strides = array<i32>} : memref<2x8x32xf32, #tpu.memory_space<vmem>>, vector<2x8x32xf32>,
    return
  }
  func.func @transform_0(%arg0: i32, %arg1: i32) -> (i32, i32, i32) {
    %c0_i32 = arith.constant 0 : i32
    %c0_i32_0 = arith.constant 0 : i32
    %c0_i32_1 = arith.constant 0 : i32
    return %arg0, %c0_i32, %c0_i32_0 : i32, i32, i32
  }
  func.func @transform_1(%arg0: i32, %arg1: i32) -> (i32, i32, i32) {
    %c0_i32 = arith.constant 0 : i32
    %c0_i32_0 = arith.constant 0 : i32
    %c0_i32_1 = arith.constant 0 : i32
    return %arg1, %c0_i32, %c0_i32_0 : i32, i32, i32
  }
  func.func @transform_2(%arg0: i32, %arg1: i32) -> (i32, i32, i32) {
    %c0_i32 = arith.constant 0 : i32
    %c0_i32_0 = arith.constant 0 : i32
    %c0_i32_1 = arith.constant 0 : i32
    return %arg1, %c0_i32, %c0_i32_0 : i32, i32, i32
  }
  func.func @transform_3(%arg0: i32, %arg1: i32) -> (i32, i32, i32, i32) {
    %c0_i32 = arith.constant 0 : i32
    %c0_i32_0 = arith.constant 0 : i32
    %c0_i32_1 = arith.constant 0 : i32
    %c0_i32_2 = arith.constant 0 : i32
    return %arg1, %c0_i32, %c0_i32_0, %c0_i32_1 : i32, i32, i32, i32
  }
  func.func @transform_4(%arg0: i32, %arg1: i32) -> (i32, i32, i32) {
    %c0_i32 = arith.constant 0 : i32
    %c0_i32_0 = arith.constant 0 : i32
    %c0_i32_1 = arith.constant 0 : i32
    return %arg1, %c0_i32, %c0_i32_0 : i32, i32, i32
  }
  func.func @transform_5(%arg0: i32, %arg1: i32) -> (i32, i32, i32) {
    %c0_i32 = arith.constant 0 : i32
    %c0_i32_0 = arith.constant 0 : i32
    %c0_i32_1 = arith.constant 0 : i32
    return %arg1, %c0_i32, %c0_i32_0 : i32, i32, i32
  }
  func.func @transform_6(%arg0: i32, %arg1: i32) -> (i32, i32, i32) {
    %c0_i32 = arith.constant 0 : i32
    %c0_i32_0 = arith.constant 0 : i32
    %c0_i32_1 = arith.constant 0 : i32
    return %arg1, %c0_i32, %c0_i32_0 : i32, i32, i32
  }
  func.func @transform_7(%arg0: i32, %arg1: i32) -> (i32, i32, i32) {
    %c0_i32 = arith.constant 0 : i32
    %c0_i32_0 = arith.constant 0 : i32
    %c0_i32_1 = arith.constant 0 : i32
    return %arg0, %c0_i32, %c0_i32_0 : i32, i32, i32
  }
}

</mosaic_0001>

<llo_original>
// kernel: tpu_custom_call.1
$region0: #{tpu_custom_call.1}
  #allocation0 [shape = 'u32[]', space=smem, size = 0x4, offset = 0x4, fixed_abs, tag = 'smem constant byte address 0x4 - core index']
  #allocation1 [shape = 'u32[144,128]{1,0:T(1,128)}', space=vmem, size = 0x12000, scoped, tag = 'internal scratch']
  %s0 = inlined_call_operand.vmem [shape: f32[2,8,32], index: 0, kind: input, shape index: {}]
  %s1 = inlined_call_operand.vmem [shape: f32[2,1,32], index: 1, kind: input, shape index: {}]
  %s2 = inlined_call_operand.vmem [shape: bf16[2,96,32], index: 2, kind: input, shape index: {}]
  %s3 = inlined_call_operand.vmem [shape: bf16[2,4,8,32], index: 3, kind: input, shape index: {}]
  %s4 = inlined_call_operand.vmem [shape: f32[2,1,32], index: 4, kind: input, shape index: {}]
  %s5 = inlined_call_operand.vmem [shape: bf16[2,32,128], index: 5, kind: input, shape index: {}]
  %s6 = inlined_call_operand.vmem [shape: bf16[2,128,32], index: 6, kind: input, shape index: {}]
  %s7 = inlined_call_operand.hbm [shape: f32[2,8,32], index: 7, kind: output, shape index: {}]
  %s8 = sld [smem:[#allocation0]]
  $region65: #{tpu_custom_call.1} parent=0
    _
  %s10 = ssub.s32 1, %s8
  %s11 = scalar_select 0, %s10, %s8
  $region1: #{tpu_custom_call.1} parent=0
    #allocation2 [shape = 'u8[8192]{0}', space=vmem, size = 0x2000, scoped, tag = 'output window, operand 0, single buffered']
    #allocation3 [shape = 's32[2]{0}', space=sflag, size = 0x8, scoped, tag = 'scoped memory for tpu_custom_call.1']
    %12 = vsyncpa [#allocation3], 0
    loop: start=0, step=1, limit=4
    $region2: #{tpu_custom_call.1} parent=1 // loop_pre_header
      _
    $region3: #{tpu_custom_call.1} parent=1 // loop_header
      %s14 = sphi 0, %s18
      %p15 = scmp.ge.s32.totalorder %s14, 4
      %s21 = sphi 0, %s33
      %s22 = sphi 0, %s29
      %s23 = sphi 0, %s21
      %s24 = sphi 0, %s22
      %s25 = sphi 0, %s23
      %s26 = sphi 0, %s24
      %s36 = sphi 0, %s38
      %s39 = sphi 0, %s36
      %s40 = sphi 0, %s39
      %s56 = sphi 0, %s40
      %s62 = sphi 0, %s64
      %s65 = sphi 0, %s62
      %s66 = sphi 0, %s65
      %s82 = sphi 0, %s66
      %s88 = sphi 0, %s90
      %s91 = sphi 0, %s88
      %s92 = sphi 0, %s91
      %s108 = sphi 0, %s92
      %s114 = sphi 0, %s116
      %s117 = sphi 0, %s114
      %s118 = sphi 0, %s117
      %s134 = sphi 0, %s118
      %s140 = sphi 0, %s142
      %s143 = sphi 0, %s140
      %s144 = sphi 0, %s143
      %s160 = sphi 0, %s144
      %s166 = sphi 0, %s168
      %s169 = sphi 0, %s166
      %s170 = sphi 0, %s169
      %s186 = sphi 0, %s170
      %s192 = sphi 0, %s194
      %s195 = sphi 0, %s192
      %s196 = sphi 0, %s195
      %s212 = sphi 0, %s196
      %s218 = sphi 0, %s220
      %s221 = sphi 0, %s218
      %s222 = sphi 0, %s221
      %s238 = sphi 0, %s222
    $region4: #{tpu_custom_call.1} parent=1 // loop_header_branch
      %17 = sbr.rel (%p15) target = $region8
    $region5: #{tpu_custom_call.1} parent=1 // loop_body
      %s19 = ssub.s32 %s14, 1
      %s20 = ssub.s32 %s14, 2
      %s27 = sadd.s32 1, %s22
      %p28 = scmp.ge.s32.totalorder %s27, 2
      %s29 = scalar_select %p28, 0, %s27
      %s30 = sadd.s32 1, %s21
      %s31 = scalar_select %p28, %s30, %s21
      %p32 = scmp.ge.s32.totalorder %s31, 1
      %s33 = scalar_select %p32, 0, %s31
      %s34 = ssub.s32 %s21, %s33
      %p35 = scmp.eq.s32.totalorder %s34, 0
      %s37 = sadd.s32 %s36, 1
      %s38 = scalar_select %p35, %s36, %s37
      %p41 = pneg %p35
      %p42 = scmp.eq.s32.totalorder %s14, 1
      %p43 = por %p41, %p42
      %p44 = scmp.ne.s32.totalorder %s36, %s39
      %p45 = scmp.eq.s32.totalorder %s14, 0
      %p46 = por %p44, %p45
      %p47 = scmp.ne.s32.totalorder %s36, %s39
      %p48 = scmp.eq.s32.totalorder %s19, 1
      %p49 = por %p47, %p48
      %p50 = scmp.ne.s32.totalorder %s39, %s40
      %p51 = scmp.eq.s32.totalorder %s19, 0
      %p52 = por %p50, %p51
      %p53 = scmp.ne.s32.totalorder %s39, %s40
      %p54 = scmp.eq.s32.totalorder %s20, 1
      %p55 = por %p53, %p54
      %p57 = scmp.ne.s32.totalorder %s40, %s56
      %p58 = scmp.eq.s32.totalorder %s20, 0
      %p59 = por %p57, %p58
      %s60 = ssub.s32 %s22, %s29
      %p61 = scmp.eq.s32.totalorder %s60, 0
      %s63 = sadd.s32 %s62, 1
      %s64 = scalar_select %p61, %s62, %s63
      %p67 = pneg %p61
      %p68 = scmp.eq.s32.totalorder %s14, 1
      %p69 = por %p67, %p68
      %p70 = scmp.ne.s32.totalorder %s62, %s65
      %p71 = scmp.eq.s32.totalorder %s14, 0
      %p72 = por %p70, %p71
      %p73 = scmp.ne.s32.totalorder %s62, %s65
      %p74 = scmp.eq.s32.totalorder %s19, 1
      %p75 = por %p73, %p74
      %p76 = scmp.ne.s32.totalorder %s65, %s66
      %p77 = scmp.eq.s32.totalorder %s19, 0
      %p78 = por %p76, %p77
      %p79 = scmp.ne.s32.totalorder %s65, %s66
      %p80 = scmp.eq.s32.totalorder %s20, 1
      %p81 = por %p79, %p80
      %p83 = scmp.ne.s32.totalorder %s66, %s82
      %p84 = scmp.eq.s32.totalorder %s20, 0
      %p85 = por %p83, %p84
      %s86 = ssub.s32 %s22, %s29
      %p87 = scmp.eq.s32.totalorder %s86, 0
      %s89 = sadd.s32 %s88, 1
      %s90 = scalar_select %p87, %s88, %s89
      %p93 = pneg %p87
      %p94 = scmp.eq.s32.totalorder %s14, 1
      %p95 = por %p93, %p94
      %p96 = scmp.ne.s32.totalorder %s88, %s91
      %p97 = scmp.eq.s32.totalorder %s14, 0
      %p98 = por %p96, %p97
      %p99 = scmp.ne.s32.totalorder %s88, %s91
      %p100 = scmp.eq.s32.totalorder %s19, 1
      %p101 = por %p99, %p100
      %p102 = scmp.ne.s32.totalorder %s91, %s92
      %p103 = scmp.eq.s32.totalorder %s19, 0
      %p104 = por %p102, %p103
      %p105 = scmp.ne.s32.totalorder %s91, %s92
      %p106 = scmp.eq.s32.totalorder %s20, 1
      %p107 = por %p105, %p106
      %p109 = scmp.ne.s32.totalorder %s92, %s108
      %p110 = scmp.eq.s32.totalorder %s20, 0
      %p111 = por %p109, %p110
      %s112 = ssub.s32 %s22, %s29
      %p113 = scmp.eq.s32.totalorder %s112, 0
      %s115 = sadd.s32 %s114, 1
      %s116 = scalar_select %p113, %s114, %s115
      %p119 = pneg %p113
      %p120 = scmp.eq.s32.totalorder %s14, 1
      %p121 = por %p119, %p120
      %p122 = scmp.ne.s32.totalorder %s114, %s117
      %p123 = scmp.eq.s32.totalorder %s14, 0
      %p124 = por %p122, %p123
      %p125 = scmp.ne.s32.totalorder %s114, %s117
      %p126 = scmp.eq.s32.totalorder %s19, 1
      %p127 = por %p125, %p126
      %p128 = scmp.ne.s32.totalorder %s117, %s118
      %p129 = scmp.eq.s32.totalorder %s19, 0
      %p130 = por %p128, %p129
      %p131 = scmp.ne.s32.totalorder %s117, %s118
      %p132 = scmp.eq.s32.totalorder %s20, 1
      %p133 = por %p131, %p132
      %p135 = scmp.ne.s32.totalorder %s118, %s134
      %p136 = scmp.eq.s32.totalorder %s20, 0
      %p137 = por %p135, %p136
      %s138 = ssub.s32 %s22, %s29
      %p139 = scmp.eq.s32.totalorder %s138, 0
      %s141 = sadd.s32 %s140, 1
      %s142 = scalar_select %p139, %s140, %s141
      %p145 = pneg %p139
      %p146 = scmp.eq.s32.totalorder %s14, 1
      %p147 = por %p145, %p146
      %p148 = scmp.ne.s32.totalorder %s140, %s143
      %p149 = scmp.eq.s32.totalorder %s14, 0
      %p150 = por %p148, %p149
      %p151 = scmp.ne.s32.totalorder %s140, %s143
      %p152 = scmp.eq.s32.totalorder %s19, 1
      %p153 = por %p151, %p152
      %p154 = scmp.ne.s32.totalorder %s143, %s144
      %p155 = scmp.eq.s32.totalorder %s19, 0
      %p156 = por %p154, %p155
      %p157 = scmp.ne.s32.totalorder %s143, %s144
      %p158 = scmp.eq.s32.totalorder %s20, 1
      %p159 = por %p157, %p158
      %p161 = scmp.ne.s32.totalorder %s144, %s160
      %p162 = scmp.eq.s32.totalorder %s20, 0
      %p163 = por %p161, %p162
      %s164 = ssub.s32 %s22, %s29
      %p165 = scmp.eq.s32.totalorder %s164, 0
      %s167 = sadd.s32 %s166, 1
      %s168 = scalar_select %p165, %s166, %s167
      %p171 = pneg %p165
      %p172 = scmp.eq.s32.totalorder %s14, 1
      %p173 = por %p171, %p172
      %p174 = scmp.ne.s32.totalorder %s166, %s169
      %p175 = scmp.eq.s32.totalorder %s14, 0
      %p176 = por %p174, %p175
      %p177 = scmp.ne.s32.totalorder %s166, %s169
      %p178 = scmp.eq.s32.totalorder %s19, 1
      %p179 = por %p177, %p178
      %p180 = scmp.ne.s32.totalorder %s169, %s170
      %p181 = scmp.eq.s32.totalorder %s19, 0
      %p182 = por %p180, %p181
      %p183 = scmp.ne.s32.totalorder %s169, %s170
      %p184 = scmp.eq.s32.totalorder %s20, 1
      %p185 = por %p183, %p184
      %p187 = scmp.ne.s32.totalorder %s170, %s186
      %p188 = scmp.eq.s32.totalorder %s20, 0
      %p189 = por %p187, %p188
      %s190 = ssub.s32 %s22, %s29
      %p191 = scmp.eq.s32.totalorder %s190, 0
      %s193 = sadd.s32 %s192, 1
      %s194 = scalar_select %p191, %s192, %s193
      %p197 = pneg %p191
      %p198 = scmp.eq.s32.totalorder %s14, 1
      %p199 = por %p197, %p198
      %p200 = scmp.ne.s32.totalorder %s192, %s195
      %p201 = scmp.eq.s32.totalorder %s14, 0
      %p202 = por %p200, %p201
      %p203 = scmp.ne.s32.totalorder %s192, %s195
      %p204 = scmp.eq.s32.totalorder %s19, 1
      %p205 = por %p203, %p204
      %p206 = scmp.ne.s32.totalorder %s195, %s196
      %p207 = scmp.eq.s32.totalorder %s19, 0
      %p208 = por %p206, %p207
      %p209 = scmp.ne.s32.totalorder %s195, %s196
      %p210 = scmp.eq.s32.totalorder %s20, 1
      %p211 = por %p209, %p210
      %p213 = scmp.ne.s32.totalorder %s196, %s212
      %p214 = scmp.eq.s32.totalorder %s20, 0
      %p215 = por %p213, %p214
      %s216 = ssub.s32 %s21, %s33
      %p217 = scmp.eq.s32.totalorder %s216, 0
      %s219 = sadd.s32 %s218, 1
      %s220 = scalar_select %p217, %s218, %s219
      %p223 = pneg %p217
      %p224 = scmp.eq.s32.totalorder %s14, 1
      %p225 = por %p223, %p224
      %p226 = scmp.ne.s32.totalorder %s218, %s221
      %p227 = scmp.eq.s32.totalorder %s14, 0
      %p228 = por %p226, %p227
      %p229 = scmp.ne.s32.totalorder %s218, %s221
      %p230 = scmp.eq.s32.totalorder %s19, 1
      %p231 = por %p229, %p230
      %p232 = scmp.ne.s32.totalorder %s221, %s222
      %p233 = scmp.eq.s32.totalorder %s19, 0
      %p234 = por %p232, %p233
      %p235 = scmp.ne.s32.totalorder %s221, %s222
      %p236 = scmp.eq.s32.totalorder %s20, 1
      %p237 = por %p235, %p236
      %p239 = scmp.ne.s32.totalorder %s222, %s238
      %p240 = scmp.eq.s32.totalorder %s20, 0
      %p241 = por %p239, %p240
      %p242 = scmp.le.s32.totalorder 1, %s14
      %p243 = scmp.lt.s32.totalorder %s14, 3
      %p244 = pnand %p242, %p243
      %p245 = pneg %p244
      // Predicated region
      $region9: #{tpu_custom_call.1} parent=5 // pred_check
        _
      $region10: #{tpu_custom_call.1} parent=5 // pred_check_branch
        %247 = sbr.rel (%p244) target = $region12
      $region11: #{tpu_custom_call.1} parent=5 // pred_region
        %s248 = ssub.s32 %s14, 1
        // Predicated region
        $region13: #{tpu_custom_call.1} parent=11 // pred_check
          %p249 = pneg %p52
        $region14: #{tpu_custom_call.1} parent=11 // pred_check_branch
          %251 = sbr.rel (%p249) target = $region16
        $region15: #{tpu_custom_call.1} parent=11 // pred_region
          %s252 = smul.u32 2, %s23
          %p253 = scmp.lt.s32.totalorder %s252, 1
          %s254 = scalar_select %p253, %s252, 1
          %s255 = smul.addr %s254, 8
          %s256 = scalar_lea.vmem %s0, %s255
          %s257 = smul.u32 2, %s23
        $region16: #{tpu_custom_call.1} parent=11 // pred_fallthru
          _
      $region12: #{tpu_custom_call.1} parent=5 // pred_fallthru
        _
      %p258 = scmp.lt.s32.totalorder %s14, 2
      // Predicated region
      $region17: #{tpu_custom_call.1} parent=5 // pred_check
        %p259 = pneg %p258
      $region18: #{tpu_custom_call.1} parent=5 // pred_check_branch
        %261 = sbr.rel (%p259) target = $region20
      $region19: #{tpu_custom_call.1} parent=5 // pred_region
        // Predicated region
        $region21: #{tpu_custom_call.1} parent=19 // pred_check
          %p262 = pneg %p72
        $region22: #{tpu_custom_call.1} parent=19 // pred_check_branch
          %264 = sbr.rel (%p262) target = $region24
        $region23: #{tpu_custom_call.1} parent=19 // pred_region
          %p265 = scmp.lt.s32.totalorder %s22, 1
          %s266 = scalar_select %p265, %s22, 1
          %s267 = scalar_lea.vmem %s1, %s266
        $region24: #{tpu_custom_call.1} parent=19 // pred_fallthru
          _
        // Predicated region
        $region25: #{tpu_custom_call.1} parent=19 // pred_check
          %p268 = pneg %p98
        $region26: #{tpu_custom_call.1} parent=19 // pred_check_branch
          %270 = sbr.rel (%p268) target = $region28
        $region27: #{tpu_custom_call.1} parent=19 // pred_region
          %p271 = scmp.lt.s32.totalorder %s22, 1
          %s272 = scalar_select %p271, %s22, 1
          %s273 = smul.addr %s272, 12
          %s274 = smul.addr %s273, 4
          %s275 = scalar_lea.vmem %s2, %s274
        $region28: #{tpu_custom_call.1} parent=19 // pred_fallthru
          _
        // Predicated region
        $region29: #{tpu_custom_call.1} parent=19 // pred_check
          %p276 = pneg %p124
        $region30: #{tpu_custom_call.1} parent=19 // pred_check_branch
          %278 = sbr.rel (%p276) target = $region32
        $region31: #{tpu_custom_call.1} parent=19 // pred_region
          %p279 = scmp.lt.s32.totalorder %s22, 1
          %s280 = scalar_select %p279, %s22, 1
          %s281 = smul.addr %s280, 4
          %s282 = smul.addr %s281, 4
          %s283 = scalar_lea.vmem %s3, %s282
        $region32: #{tpu_custom_call.1} parent=19 // pred_fallthru
          _
        // Predicated region
        $region33: #{tpu_custom_call.1} parent=19 // pred_check
          %p284 = pneg %p150
        $region34: #{tpu_custom_call.1} parent=19 // pred_check_branch
          %286 = sbr.rel (%p284) target = $region36
        $region35: #{tpu_custom_call.1} parent=19 // pred_region
          %p287 = scmp.lt.s32.totalorder %s22, 1
          %s288 = scalar_select %p287, %s22, 1
          %s289 = scalar_lea.vmem %s4, %s288
        $region36: #{tpu_custom_call.1} parent=19 // pred_fallthru
          _
        // Predicated region
        $region37: #{tpu_custom_call.1} parent=19 // pred_check
          %p290 = pneg %p176
        $region38: #{tpu_custom_call.1} parent=19 // pred_check_branch
          %292 = sbr.rel (%p290) target = $region40
        $region39: #{tpu_custom_call.1} parent=19 // pred_region
          %p293 = scmp.lt.s32.totalorder %s22, 1
          %s294 = scalar_select %p293, %s22, 1
          %s295 = smul.addr %s294, 4
          %s296 = smul.addr %s295, 4
          %s297 = scalar_lea.vmem %s5, %s296
        $region40: #{tpu_custom_call.1} parent=19 // pred_fallthru
          _
        // Predicated region
        $region41: #{tpu_custom_call.1} parent=19 // pred_check
          %p298 = pneg %p202
        $region42: #{tpu_custom_call.1} parent=19 // pred_check_branch
          %300 = sbr.rel (%p298) target = $region44
        $region43: #{tpu_custom_call.1} parent=19 // pred_region
          %p301 = scmp.lt.s32.totalorder %s22, 1
          %s302 = scalar_select %p301, %s22, 1
          %s303 = smul.addr %s302, 16
          %s304 = smul.addr %s303, 4
          %s305 = scalar_lea.vmem %s6, %s304
        $region44: #{tpu_custom_call.1} parent=19 // pred_fallthru
          _
      $region20: #{tpu_custom_call.1} parent=5 // pred_fallthru
        _
      %p306 = scmp.le.s32.totalorder 1, %s14
      %p307 = scmp.lt.s32.totalorder %s14, 3
      %p308 = pnand %p306, %p307
      %p309 = pneg %p308
      // Predicated region
      $region45: #{tpu_custom_call.1} parent=5 // pred_check
        _
      $region46: #{tpu_custom_call.1} parent=5 // pred_check_branch
        %311 = sbr.rel (%p308) target = $region48
      $region47: #{tpu_custom_call.1} parent=5 // pred_region
        %s312 = ssub.s32 %s14, 1
        %s313 = smul.u32 2, %s23
        %p314 = scmp.lt.s32.totalorder %s313, 1
        %s315 = scalar_select %p314, %s313, 1
        %s316 = smul.addr %s315, 8
        %s317 = scalar_lea.vmem %s0, %s316
        %p318 = pneg %p52
        %p319 = pneg %p49
        %p320 = scmp.lt.s32.totalorder %s24, 1
        %s321 = scalar_select %p320, %s24, 1
        %s322 = scalar_lea.vmem %s1, %s321
        %p323 = pneg %p78
        %p324 = pneg %p75
        %p325 = scmp.lt.s32.totalorder %s24, 1
        %s326 = scalar_select %p325, %s24, 1
        %s327 = smul.addr %s326, 12
        %s328 = smul.addr %s327, 4
        %s329 = scalar_lea.vmem %s2, %s328
        %p330 = pneg %p104
        %p331 = pneg %p101
        %p332 = scmp.lt.s32.totalorder %s24, 1
        %s333 = scalar_select %p332, %s24, 1
        %s334 = smul.addr %s333, 4
        %s335 = smul.addr %s334, 4
        %s336 = scalar_lea.vmem %s3, %s335
        %p337 = pneg %p130
        %p338 = pneg %p127
        %p339 = scmp.lt.s32.totalorder %s24, 1
        %s340 = scalar_select %p339, %s24, 1
        %s341 = scalar_lea.vmem %s4, %s340
        %p342 = pneg %p156
        %p343 = pneg %p153
        %p344 = scmp.lt.s32.totalorder %s24, 1
        %s345 = scalar_select %p344, %s24, 1
        %s346 = smul.addr %s345, 4
        %s347 = smul.addr %s346, 4
        %s348 = scalar_lea.vmem %s5, %s347
        %p349 = pneg %p182
        %p350 = pneg %p179
        %p351 = scmp.lt.s32.totalorder %s24, 1
        %s352 = scalar_select %p351, %s24, 1
        %s353 = smul.addr %s352, 16
        %s354 = smul.addr %s353, 4
        %s355 = scalar_lea.vmem %s6, %s354
        %p356 = pneg %p208
        %p357 = pneg %p205
        %p358 = pneg %p234
        %p359 = pneg %p231
        %s360 = smul.u32 2, %s23
        %p361 = scmp.lt.s32.totalorder %s360, 1
        %s362 = scalar_select %p361, %s360, 1
        %s363 = smul.addr %s362, 8
        %s364 = scalar_lea.vmem %s0, %s363
        %s365 = smul.u32 2, %s23
        %p366 = scmp.lt.s32.totalorder %s24, 1
        %s367 = scalar_select %p366, %s24, 1
        %s368 = scalar_lea.vmem %s1, %s367
        %p369 = scmp.lt.s32.totalorder %s24, 1
        %s370 = scalar_select %p369, %s24, 1
        %s371 = smul.addr %s370, 12
        %s372 = smul.addr %s371, 4
        %s373 = scalar_lea.vmem %s2, %s372
        %p374 = scmp.lt.s32.totalorder %s24, 1
        %s375 = scalar_select %p374, %s24, 1
        %s376 = smul.addr %s375, 4
        %s377 = smul.addr %s376, 4
        %s378 = scalar_lea.vmem %s3, %s377
        %p379 = scmp.lt.s32.totalorder %s24, 1
        %s380 = scalar_select %p379, %s24, 1
        %s381 = scalar_lea.vmem %s4, %s380
        %p382 = scmp.lt.s32.totalorder %s24, 1
        %s383 = scalar_select %p382, %s24, 1
        %s384 = smul.addr %s383, 4
        %s385 = smul.addr %s384, 4
        %s386 = scalar_lea.vmem %s5, %s385
        %p387 = scmp.lt.s32.totalorder %s24, 1
        %s388 = scalar_select %p387, %s24, 1
        %s389 = smul.addr %s388, 16
        %s390 = smul.addr %s389, 4
        %s391 = scalar_lea.vmem %s6, %s390
        %s392 = smul.u32 2, %s23
        %p394 = scmp.eq.s32.totalorder %s24, 0
        // Predicated region
        $region49: #{tpu_custom_call.1} parent=47 // pred_check
          %p395 = pneg %p394
        $region50: #{tpu_custom_call.1} parent=47 // pred_check_branch
          %397 = sbr.rel (%p395) target = $region52
        $region51: #{tpu_custom_call.1} parent=47 // pred_region
          %v398 = vld [vmem:[%s364] sm:$0xff]
          %v399 = vld [vmem:[%s364 + $0x8] sm:$0xff]
          %vm400 = vcmask 261120
          %401 = vst.msk [vmem:[#allocation2] sm:$0xff] %vm400, %v398
          %402 = vst.msk [vmem:[#allocation2 + $0x8] sm:$0xff] %vm400, %v399
        $region52: #{tpu_custom_call.1} parent=47 // pred_fallthru
          _
        %v403 = vld [vmem:[#allocation2] sm:$0xff]
        %v404 = vld [vmem:[#allocation2 + $0x8] sm:$0xff]
        %v405 = vld [vmem:[%s368] sm:$0x1]
        %v406 = vld [vmem:[%s381] sm:$0x1]
        %v407 = vmul.f32 %v403, %v403
        %v408 = vmul.f32 %v404, %v404
        %vm409 = vcmask 261120
        %v410 = vsel %vm409, %v407, 0.0
        %411 = vadd.xlane.f32.xlu0 %v410
        %v412 = vpop.xlane.xlu0 %411
        %v413 = vsel %vm409, %v408, 0.0
        %414 = vadd.xlane.f32.xlu0 %v413
        %v415 = vpop.xlane.xlu0 %414
        %v416 = vrcp.pop 32.0
        %v417 = vmul.f32 %v412, %v416
        %v418 = vmul.f32 %v415, %v416
        %v419 = vadd.f32 %v417, 1e-06
        %v420 = vadd.f32 %v418, 1e-06
        %v421 = vrsqrt.pop %v419
        %v422 = vrsqrt.pop %v420
        %v423 = vmul.f32 %v403, %v421
        %v424 = vmul.f32 %v404, %v422
        %v426 = vlaneseq
        %v427 = vshrl.u32 %v426, 7
        %v428 = vsub.s32 0, %v427
        %v429 = vrot.slane %v405, %v428
        %v431 = vmul.f32 %v423, %v429
        %v432 = vmul.f32 %v424, %v429
        %433 = vxpose.xlu0.b32.start [1/16] %v431, 128
        %434 = vxpose.xlu0.b32.cont [2/16] %v432, 128
        %435 = vxpose.xlu0.b32.cont [3/16] 0.0, 128
        %436 = vxpose.xlu0.b32.cont [4/16] 0.0, 128
        %437 = vxpose.xlu0.b32.cont [5/16] 0.0, 128
        %438 = vxpose.xlu0.b32.cont [6/16] 0.0, 128
        %439 = vxpose.xlu0.b32.cont [7/16] 0.0, 128
        %440 = vxpose.xlu0.b32.cont [8/16] 0.0, 128
        %441 = vxpose.xlu0.b32.cont [9/16] 0.0, 128
        %442 = vxpose.xlu0.b32.cont [10/16] 0.0, 128
        %443 = vxpose.xlu0.b32.cont [11/16] 0.0, 128
        %444 = vxpose.xlu0.b32.cont [12/16] 0.0, 128
        %445 = vxpose.xlu0.b32.cont [13/16] 0.0, 128
        %446 = vxpose.xlu0.b32.cont [14/16] 0.0, 128
        %447 = vxpose.xlu0.b32.cont [15/16] 0.0, 128
        %448 = vxpose.xlu0.b32.end [16/16] 0.0, 128
        %v449 = vpop.trf.xlu0
        %v450 = vpop.trf.xlu0
        %v451 = vpop.trf.xlu0
        %v452 = vpop.trf.xlu0
        %v453 = vpop.trf.xlu0
        %v454 = vpop.trf.xlu0
        %v455 = vpop.trf.xlu0
        %v456 = vpop.trf.xlu0
        %v457 = vpop.trf.xlu0
        %v458 = vpop.trf.xlu0
        %v459 = vpop.trf.xlu0
        %v460 = vpop.trf.xlu0
        %v461 = vpop.trf.xlu0
        %v462 = vpop.trf.xlu0
        %v463 = vpop.trf.xlu0
        %v464 = vpop.trf.xlu0
        %v465 = vpack.c.bf16 %v450, %v449
        %v466 = vpack.c.bf16 %v452, %v451
        %v467 = vld [vmem:[%s373] sm:$0xf]
        %v468 = vld [vmem:[%s373 + $0x4] sm:$0xf]
        %v469 = vld [vmem:[%s373 + $0x8] sm:$0xf]
        %v470 = vld [vmem:[%s373 + $0xc] sm:$0xf]
        %v471 = vld [vmem:[%s373 + $0x10] sm:$0xf]
        %v472 = vld [vmem:[%s373 + $0x14] sm:$0xf]
        %v473 = vld [vmem:[%s373 + $0x18] sm:$0xf]
        %v474 = vld [vmem:[%s373 + $0x1c] sm:$0xf]
        %v475 = vld [vmem:[%s373 + $0x20] sm:$0xf]
        %v476 = vld [vmem:[%s373 + $0x24] sm:$0xf]
        %v477 = vld [vmem:[%s373 + $0x28] sm:$0xf]
        %v478 = vld [vmem:[%s373 + $0x2c] sm:$0xf]
        %v491 = vunpack.c.l.b16 %v467
        %v492 = vunpack.c.l.b16 %v468
        %v493 = vunpack.c.l.b16 %v469
        %v494 = vunpack.c.l.b16 %v470
        %v495 = vunpack.c.l.b16 %v471
        %v496 = vunpack.c.l.b16 %v472
        %v497 = vunpack.c.l.b16 %v473
        %v498 = vunpack.c.l.b16 %v474
        %v499 = vunpack.c.l.b16 %v475
        %v500 = vunpack.c.l.b16 %v476
        %v501 = vunpack.c.l.b16 %v477
        %v502 = vunpack.c.l.b16 %v478
        %v503 = vpack.c.b16 %v492, %v491
        %v504 = vpack.c.b16 %v494, %v493
        %v505 = vpack.c.b16 %v496, %v495
        %v506 = vpack.c.b16 %v498, %v497
        %v507 = vpack.c.b16 %v500, %v499
        %v508 = vpack.c.b16 %v502, %v501
        %v510 = vsel %vm409, %v503, 0
        %v513 = vsel %vm409, %v504, 0
        %v516 = vsel %vm409, %v505, 0
        %v519 = vsel %vm409, %v506, 0
        %v522 = vsel %vm409, %v507, 0
        %v525 = vsel %vm409, %v508, 0
        %527 = vmatprep.subr.bf16.mxu0 0
        %528 = vmatpush1.bf16.msra.mxu0 0
        %529 = vmatprep.subr.bf16.mxu0 0
        %530 = vmatpush1.bf16.msra.mxu0 0
        %531 = vmatprep.subr.bf16.mxu0 0
        %532 = vmatpush1.bf16.msra.mxu0 0
        %533 = vmatprep.subr.bf16.mxu0 0
        %534 = vmatpush1.bf16.msra.mxu0 0
        %535 = vmatprep.subr.bf16.mxu0 0
        %536 = vmatpush1.bf16.msra.mxu0 0
        %537 = vmatprep.subr.bf16.mxu0 0
        %538 = vmatpush1.bf16.msra.mxu0 0
        %539 = vmatprep.subr.bf16.mxu0 0
        %540 = vmatpush1.bf16.msra.mxu0 %v466
        %541 = vmatprep.subr.bf16.mxu0 0
        %542 = vmatpush1.bf16.msra.mxu0 %v465
        %543 = vmatprep.subr.bf16.mxu0 0
        %544 = vmatpush2.bf16.msra.mxu0 0
        %545 = vmatprep.subr.bf16.mxu0 0
        %546 = vmatpush2.bf16.msra.mxu0 0
        %547 = vmatprep.subr.bf16.mxu0 0
        %548 = vmatpush2.bf16.msra.mxu0 0
        %549 = vmatprep.subr.bf16.mxu0 0
        %550 = vmatpush2.bf16.msra.mxu0 0
        %551 = vmatprep.subr.bf16.mxu0 0
        %552 = vmatpush2.bf16.msra.mxu0 0
        %553 = vmatprep.subr.bf16.mxu0 0
        %554 = vmatpush2.bf16.msra.mxu0 0
        %555 = vmatprep.subr.bf16.mxu0 0
        %556 = vmatpush2.bf16.msra.mxu0 0
        %557 = vmatprep.subr.bf16.mxu0 0
        %558 = vmatpush2.bf16.msra.mxu0 0
        %559 = vmatprep.mubr.bf16.mxu0 0
        %560 = vmatmul.mubr.bf16.gmra.mxu0 %v510
        %v561 = vpop.f32.mrf.mxu0
        %v562 = vadd.f32 0.0, %v561
        %v563 = vpop.f32.mrf.mxu0
        %v564 = vpop.f32.mrf.mxu0
        %v565 = vadd.f32 0.0, %v564
        %v566 = vpop.f32.mrf.mxu0
        %567 = vmatprep.mubr.bf16.mxu0 0
        %568 = vmatmul.mubr.bf16.gmra.mxu0 %v513
        %v569 = vpop.f32.mrf.mxu0
        %v570 = vadd.f32 0.0, %v569
        %v571 = vpop.f32.mrf.mxu0
        %v572 = vpop.f32.mrf.mxu0
        %v573 = vadd.f32 0.0, %v572
        %v574 = vpop.f32.mrf.mxu0
        %575 = vmatprep.mubr.bf16.mxu0 0
        %576 = vmatmul.mubr.bf16.gmra.mxu0 %v516
        %v577 = vpop.f32.mrf.mxu0
        %v578 = vadd.f32 0.0, %v577
        %v579 = vpop.f32.mrf.mxu0
        %v580 = vpop.f32.mrf.mxu0
        %v581 = vadd.f32 0.0, %v580
        %v582 = vpop.f32.mrf.mxu0
        %583 = vmatprep.mubr.bf16.mxu0 0
        %584 = vmatmul.mubr.bf16.gmra.mxu0 %v519
        %v585 = vpop.f32.mrf.mxu0
        %v586 = vadd.f32 0.0, %v585
        %v587 = vpop.f32.mrf.mxu0
        %v588 = vpop.f32.mrf.mxu0
        %v589 = vadd.f32 0.0, %v588
        %v590 = vpop.f32.mrf.mxu0
        %591 = vmatprep.mubr.bf16.mxu0 0
        %592 = vmatmul.mubr.bf16.gmra.mxu0 %v522
        %v593 = vpop.f32.mrf.mxu0
        %v594 = vadd.f32 0.0, %v593
        %v595 = vpop.f32.mrf.mxu0
        %v596 = vpop.f32.mrf.mxu0
        %v597 = vadd.f32 0.0, %v596
        %v598 = vpop.f32.mrf.mxu0
        %599 = vmatprep.mubr.bf16.mxu0 0
        %600 = vmatmul.mubr.bf16.gmra.mxu0 %v525
        %v601 = vpop.f32.mrf.mxu0
        %v602 = vadd.f32 0.0, %v601
        %v603 = vpop.f32.mrf.mxu0
        %v604 = vpop.f32.mrf.mxu0
        %v605 = vadd.f32 0.0, %v604
        %v606 = vpop.f32.mrf.mxu0
        %607 = vdwg.mxu0
        %v608 = vmul.f32 %v562, 0.35355338
        %v609 = vmul.f32 %v565, 0.35355338
        %v610 = vmul.f32 %v570, 0.35355338
        %v611 = vmul.f32 %v573, 0.35355338
        %612 = vxpose.xlu0.b32.start [1/16] %v608, 128
        %613 = vxpose.xlu0.b32.cont [2/16] 0.0, 128
        %614 = vxpose.xlu0.b32.cont [3/16] 0.0, 128
        %615 = vxpose.xlu0.b32.cont [4/16] 0.0, 128
        %616 = vxpose.xlu0.b32.cont [5/16] 0.0, 128
        %617 = vxpose.xlu0.b32.cont [6/16] 0.0, 128
        %618 = vxpose.xlu0.b32.cont [7/16] 0.0, 128
        %619 = vxpose.xlu0.b32.cont [8/16] 0.0, 128
        %620 = vxpose.xlu0.b32.cont [9/16] 0.0, 128
        %621 = vxpose.xlu0.b32.cont [10/16] 0.0, 128
        %622 = vxpose.xlu0.b32.cont [11/16] 0.0, 128
        %623 = vxpose.xlu0.b32.cont [12/16] 0.0, 128
        %624 = vxpose.xlu0.b32.cont [13/16] 0.0, 128
        %625 = vxpose.xlu0.b32.cont [14/16] 0.0, 128
        %626 = vxpose.xlu0.b32.cont [15/16] 0.0, 128
        %627 = vxpose.xlu0.b32.end [16/16] 0.0, 128
        %v628 = vpop.trf.xlu0
        %v629 = vpop.trf.xlu0
        %v630 = vpop.trf.xlu0
        %v631 = vpop.trf.xlu0
        %v632 = vpop.trf.xlu0
        %v633 = vpop.trf.xlu0
        %v634 = vpop.trf.xlu0
        %v635 = vpop.trf.xlu0
        %v636 = vpop.trf.xlu0
        %v637 = vpop.trf.xlu0
        %v638 = vpop.trf.xlu0
        %v639 = vpop.trf.xlu0
        %v640 = vpop.trf.xlu0
        %v641 = vpop.trf.xlu0
        %v642 = vpop.trf.xlu0
        %v643 = vpop.trf.xlu0
        %644 = vxpose.xlu0.b32.start [1/16] %v609, 128
        %645 = vxpose.xlu0.b32.cont [2/16] 0.0, 128
        %646 = vxpose.xlu0.b32.cont [3/16] 0.0, 128
        %647 = vxpose.xlu0.b32.cont [4/16] 0.0, 128
        %648 = vxpose.xlu0.b32.cont [5/16] 0.0, 128
        %649 = vxpose.xlu0.b32.cont [6/16] 0.0, 128
        %650 = vxpose.xlu0.b32.cont [7/16] 0.0, 128
        %651 = vxpose.xlu0.b32.cont [8/16] 0.0, 128
        %652 = vxpose.xlu0.b32.cont [9/16] 0.0, 128
        %653 = vxpose.xlu0.b32.cont [10/16] 0.0, 128
        %654 = vxpose.xlu0.b32.cont [11/16] 0.0, 128
        %655 = vxpose.xlu0.b32.cont [12/16] 0.0, 128
        %656 = vxpose.xlu0.b32.cont [13/16] 0.0, 128
        %657 = vxpose.xlu0.b32.cont [14/16] 0.0, 128
        %658 = vxpose.xlu0.b32.cont [15/16] 0.0, 128
        %659 = vxpose.xlu0.b32.end [16/16] 0.0, 128
        %v660 = vpop.trf.xlu0
        %v661 = vpop.trf.xlu0
        %v662 = vpop.trf.xlu0
        %v663 = vpop.trf.xlu0
        %v664 = vpop.trf.xlu0
        %v665 = vpop.trf.xlu0
        %v666 = vpop.trf.xlu0
        %v667 = vpop.trf.xlu0
        %v668 = vpop.trf.xlu0
        %v669 = vpop.trf.xlu0
        %v670 = vpop.trf.xlu0
        %v671 = vpop.trf.xlu0
        %v672 = vpop.trf.xlu0
        %v673 = vpop.trf.xlu0
        %v674 = vpop.trf.xlu0
        %v675 = vpop.trf.xlu0
        %676 = vxpose.xlu0.b32.start [1/16] %v610, 128
        %677 = vxpose.xlu0.b32.cont [2/16] 0.0, 128
        %678 = vxpose.xlu0.b32.cont [3/16] 0.0, 128
        %679 = vxpose.xlu0.b32.cont [4/16] 0.0, 128
        %680 = vxpose.xlu0.b32.cont [5/16] 0.0, 128
        %681 = vxpose.xlu0.b32.cont [6/16] 0.0, 128
        %682 = vxpose.xlu0.b32.cont [7/16] 0.0, 128
        %683 = vxpose.xlu0.b32.cont [8/16] 0.0, 128
        %684 = vxpose.xlu0.b32.cont [9/16] 0.0, 128
        %685 = vxpose.xlu0.b32.cont [10/16] 0.0, 128
        %686 = vxpose.xlu0.b32.cont [11/16] 0.0, 128
        %687 = vxpose.xlu0.b32.cont [12/16] 0.0, 128
        %688 = vxpose.xlu0.b32.cont [13/16] 0.0, 128
        %689 = vxpose.xlu0.b32.cont [14/16] 0.0, 128
        %690 = vxpose.xlu0.b32.cont [15/16] 0.0, 128
        %691 = vxpose.xlu0.b32.end [16/16] 0.0, 128
        %v692 = vpop.trf.xlu0
        %v693 = vpop.trf.xlu0
        %v694 = vpop.trf.xlu0
        %v695 = vpop.trf.xlu0
        %v696 = vpop.trf.xlu0
        %v697 = vpop.trf.xlu0
        %v698 = vpop.trf.xlu0
        %v699 = vpop.trf.xlu0
        %v700 = vpop.trf.xlu0
        %v701 = vpop.trf.xlu0
        %v702 = vpop.trf.xlu0
        %v703 = vpop.trf.xlu0
        %v704 = vpop.trf.xlu0
        %v705 = vpop.trf.xlu0
        %v706 = vpop.trf.xlu0
        %v707 = vpop.trf.xlu0
        %708 = vxpose.xlu0.b32.start [1/16] %v611, 128
        %709 = vxpose.xlu0.b32.cont [2/16] 0.0, 128
        %710 = vxpose.xlu0.b32.cont [3/16] 0.0, 128
        %711 = vxpose.xlu0.b32.cont [4/16] 0.0, 128
        %712 = vxpose.xlu0.b32.cont [5/16] 0.0, 128
        %713 = vxpose.xlu0.b32.cont [6/16] 0.0, 128
        %714 = vxpose.xlu0.b32.cont [7/16] 0.0, 128
        %715 = vxpose.xlu0.b32.cont [8/16] 0.0, 128
        %716 = vxpose.xlu0.b32.cont [9/16] 0.0, 128
        %717 = vxpose.xlu0.b32.cont [10/16] 0.0, 128
        %718 = vxpose.xlu0.b32.cont [11/16] 0.0, 128
        %719 = vxpose.xlu0.b32.cont [12/16] 0.0, 128
        %720 = vxpose.xlu0.b32.cont [13/16] 0.0, 128
        %721 = vxpose.xlu0.b32.cont [14/16] 0.0, 128
        %722 = vxpose.xlu0.b32.cont [15/16] 0.0, 128
        %723 = vxpose.xlu0.b32.end [16/16] 0.0, 128
        %v724 = vpop.trf.xlu0
        %v725 = vpop.trf.xlu0
        %v726 = vpop.trf.xlu0
        %v727 = vpop.trf.xlu0
        %v728 = vpop.trf.xlu0
        %v729 = vpop.trf.xlu0
        %v730 = vpop.trf.xlu0
        %v731 = vpop.trf.xlu0
        %v732 = vpop.trf.xlu0
        %v733 = vpop.trf.xlu0
        %v734 = vpop.trf.xlu0
        %v735 = vpop.trf.xlu0
        %v736 = vpop.trf.xlu0
        %v737 = vpop.trf.xlu0
        %v738 = vpop.trf.xlu0
        %v739 = vpop.trf.xlu0
        %v740 = vpack.c.bf16 %v628, %v628
        %v741 = vpack.c.bf16 %v629, %v629
        %v742 = vpack.c.bf16 %v660, %v660
        %v743 = vpack.c.bf16 %v661, %v661
        %v744 = vpack.c.bf16 %v692, %v692
        %v745 = vpack.c.bf16 %v693, %v693
        %v746 = vpack.c.bf16 %v724, %v724
        %v747 = vpack.c.bf16 %v725, %v725
        %748 = vxpose.xlu0.b32.start [1/16] %v578, 128
        %749 = vxpose.xlu0.b32.cont [2/16] 0.0, 128
        %750 = vxpose.xlu0.b32.cont [3/16] 0.0, 128
        %751 = vxpose.xlu0.b32.cont [4/16] 0.0, 128
        %752 = vxpose.xlu0.b32.cont [5/16] 0.0, 128
        %753 = vxpose.xlu0.b32.cont [6/16] 0.0, 128
        %754 = vxpose.xlu0.b32.cont [7/16] 0.0, 128
        %755 = vxpose.xlu0.b32.cont [8/16] 0.0, 128
        %756 = vxpose.xlu0.b32.cont [9/16] 0.0, 128
        %757 = vxpose.xlu0.b32.cont [10/16] 0.0, 128
        %758 = vxpose.xlu0.b32.cont [11/16] 0.0, 128
        %759 = vxpose.xlu0.b32.cont [12/16] 0.0, 128
        %760 = vxpose.xlu0.b32.cont [13/16] 0.0, 128
        %761 = vxpose.xlu0.b32.cont [14/16] 0.0, 128
        %762 = vxpose.xlu0.b32.cont [15/16] 0.0, 128
        %763 = vxpose.xlu0.b32.end [16/16] 0.0, 128
        %v764 = vpop.trf.xlu0
        %v765 = vpop.trf.xlu0
        %v766 = vpop.trf.xlu0
        %v767 = vpop.trf.xlu0
        %v768 = vpop.trf.xlu0
        %v769 = vpop.trf.xlu0
        %v770 = vpop.trf.xlu0
        %v771 = vpop.trf.xlu0
        %v772 = vpop.trf.xlu0
        %v773 = vpop.trf.xlu0
        %v774 = vpop.trf.xlu0
        %v775 = vpop.trf.xlu0
        %v776 = vpop.trf.xlu0
        %v777 = vpop.trf.xlu0
        %v778 = vpop.trf.xlu0
        %v779 = vpop.trf.xlu0
        %780 = vxpose.xlu0.b32.start [1/16] %v581, 128
        %781 = vxpose.xlu0.b32.cont [2/16] 0.0, 128
        %782 = vxpose.xlu0.b32.cont [3/16] 0.0, 128
        %783 = vxpose.xlu0.b32.cont [4/16] 0.0, 128
        %784 = vxpose.xlu0.b32.cont [5/16] 0.0, 128
        %785 = vxpose.xlu0.b32.cont [6/16] 0.0, 128
        %786 = vxpose.xlu0.b32.cont [7/16] 0.0, 128
        %787 = vxpose.xlu0.b32.cont [8/16] 0.0, 128
        %788 = vxpose.xlu0.b32.cont [9/16] 0.0, 128
        %789 = vxpose.xlu0.b32.cont [10/16] 0.0, 128
        %790 = vxpose.xlu0.b32.cont [11/16] 0.0, 128
        %791 = vxpose.xlu0.b32.cont [12/16] 0.0, 128
        %792 = vxpose.xlu0.b32.cont [13/16] 0.0, 128
        %793 = vxpose.xlu0.b32.cont [14/16] 0.0, 128
        %794 = vxpose.xlu0.b32.cont [15/16] 0.0, 128
        %795 = vxpose.xlu0.b32.end [16/16] 0.0, 128
        %v796 = vpop.trf.xlu0
        %v797 = vpop.trf.xlu0
        %v798 = vpop.trf.xlu0
        %v799 = vpop.trf.xlu0
        %v800 = vpop.trf.xlu0
        %v801 = vpop.trf.xlu0
        %v802 = vpop.trf.xlu0
        %v803 = vpop.trf.xlu0
        %v804 = vpop.trf.xlu0
        %v805 = vpop.trf.xlu0
        %v806 = vpop.trf.xlu0
        %v807 = vpop.trf.xlu0
        %v808 = vpop.trf.xlu0
        %v809 = vpop.trf.xlu0
        %v810 = vpop.trf.xlu0
        %v811 = vpop.trf.xlu0
        %812 = vxpose.xlu0.b32.start [1/16] %v586, 128
        %813 = vxpose.xlu0.b32.cont [2/16] 0.0, 128
        %814 = vxpose.xlu0.b32.cont [3/16] 0.0, 128
        %815 = vxpose.xlu0.b32.cont [4/16] 0.0, 128
        %816 = vxpose.xlu0.b32.cont [5/16] 0.0, 128
        %817 = vxpose.xlu0.b32.cont [6/16] 0.0, 128
        %818 = vxpose.xlu0.b32.cont [7/16] 0.0, 128
        %819 = vxpose.xlu0.b32.cont [8/16] 0.0, 128
        %820 = vxpose.xlu0.b32.cont [9/16] 0.0, 128
        %821 = vxpose.xlu0.b32.cont [10/16] 0.0, 128
        %822 = vxpose.xlu0.b32.cont [11/16] 0.0, 128
        %823 = vxpose.xlu0.b32.cont [12/16] 0.0, 128
        %824 = vxpose.xlu0.b32.cont [13/16] 0.0, 128
        %825 = vxpose.xlu0.b32.cont [14/16] 0.0, 128
        %826 = vxpose.xlu0.b32.cont [15/16] 0.0, 128
        %827 = vxpose.xlu0.b32.end [16/16] 0.0, 128
        %v828 = vpop.trf.xlu0
        %v829 = vpop.trf.xlu0
        %v830 = vpop.trf.xlu0
        %v831 = vpop.trf.xlu0
        %v832 = vpop.trf.xlu0
        %v833 = vpop.trf.xlu0
        %v834 = vpop.trf.xlu0
        %v835 = vpop.trf.xlu0
        %v836 = vpop.trf.xlu0
        %v837 = vpop.trf.xlu0
        %v838 = vpop.trf.xlu0
        %v839 = vpop.trf.xlu0
        %v840 = vpop.trf.xlu0
        %v841 = vpop.trf.xlu0
        %v842 = vpop.trf.xlu0
        %v843 = vpop.trf.xlu0
        %844 = vxpose.xlu0.b32.start [1/16] %v589, 128
        %845 = vxpose.xlu0.b32.cont [2/16] 0.0, 128
        %846 = vxpose.xlu0.b32.cont [3/16] 0.0, 128
        %847 = vxpose.xlu0.b32.cont [4/16] 0.0, 128
        %848 = vxpose.xlu0.b32.cont [5/16] 0.0, 128
        %849 = vxpose.xlu0.b32.cont [6/16] 0.0, 128
        %850 = vxpose.xlu0.b32.cont [7/16] 0.0, 128
        %851 = vxpose.xlu0.b32.cont [8/16] 0.0, 128
        %852 = vxpose.xlu0.b32.cont [9/16] 0.0, 128
        %853 = vxpose.xlu0.b32.cont [10/16] 0.0, 128
        %854 = vxpose.xlu0.b32.cont [11/16] 0.0, 128
        %855 = vxpose.xlu0.b32.cont [12/16] 0.0, 128
        %856 = vxpose.xlu0.b32.cont [13/16] 0.0, 128
        %857 = vxpose.xlu0.b32.cont [14/16] 0.0, 128
        %858 = vxpose.xlu0.b32.cont [15/16] 0.0, 128
        %859 = vxpose.xlu0.b32.end [16/16] 0.0, 128
        %v860 = vpop.trf.xlu0
        %v861 = vpop.trf.xlu0
        %v862 = vpop.trf.xlu0
        %v863 = vpop.trf.xlu0
        %v864 = vpop.trf.xlu0
        %v865 = vpop.trf.xlu0
        %v866 = vpop.trf.xlu0
        %v867 = vpop.trf.xlu0
        %v868 = vpop.trf.xlu0
        %v869 = vpop.trf.xlu0
        %v870 = vpop.trf.xlu0
        %v871 = vpop.trf.xlu0
        %v872 = vpop.trf.xlu0
        %v873 = vpop.trf.xlu0
        %v874 = vpop.trf.xlu0
        %v875 = vpop.trf.xlu0
        %v876 = vpack.c.bf16 %v764, %v764
        %v877 = vpack.c.bf16 %v765, %v765
        %v878 = vpack.c.bf16 %v796, %v796
        %v879 = vpack.c.bf16 %v797, %v797
        %v880 = vpack.c.bf16 %v828, %v828
        %v881 = vpack.c.bf16 %v829, %v829
        %v882 = vpack.c.bf16 %v860, %v860
        %v883 = vpack.c.bf16 %v861, %v861
        %884 = vxpose.xlu0.b32.start [1/16] %v594, 128
        %885 = vxpose.xlu0.b32.cont [2/16] 0.0, 128
        %886 = vxpose.xlu0.b32.cont [3/16] 0.0, 128
        %887 = vxpose.xlu0.b32.cont [4/16] 0.0, 128
        %888 = vxpose.xlu0.b32.cont [5/16] 0.0, 128
        %889 = vxpose.xlu0.b32.cont [6/16] 0.0, 128
        %890 = vxpose.xlu0.b32.cont [7/16] 0.0, 128
        %891 = vxpose.xlu0.b32.cont [8/16] 0.0, 128
        %892 = vxpose.xlu0.b32.cont [9/16] 0.0, 128
        %893 = vxpose.xlu0.b32.cont [10/16] 0.0, 128
        %894 = vxpose.xlu0.b32.cont [11/16] 0.0, 128
        %895 = vxpose.xlu0.b32.cont [12/16] 0.0, 128
        %896 = vxpose.xlu0.b32.cont [13/16] 0.0, 128
        %897 = vxpose.xlu0.b32.cont [14/16] 0.0, 128
        %898 = vxpose.xlu0.b32.cont [15/16] 0.0, 128
        %899 = vxpose.xlu0.b32.end [16/16] 0.0, 128
        %v900 = vpop.trf.xlu0
        %v901 = vpop.trf.xlu0
        %v902 = vpop.trf.xlu0
        %v903 = vpop.trf.xlu0
        %v904 = vpop.trf.xlu0
        %v905 = vpop.trf.xlu0
        %v906 = vpop.trf.xlu0
        %v907 = vpop.trf.xlu0
        %v908 = vpop.trf.xlu0
        %v909 = vpop.trf.xlu0
        %v910 = vpop.trf.xlu0
        %v911 = vpop.trf.xlu0
        %v912 = vpop.trf.xlu0
        %v913 = vpop.trf.xlu0
        %v914 = vpop.trf.xlu0
        %v915 = vpop.trf.xlu0
        %916 = vxpose.xlu0.b32.start [1/16] %v597, 128
        %917 = vxpose.xlu0.b32.cont [2/16] 0.0, 128
        %918 = vxpose.xlu0.b32.cont [3/16] 0.0, 128
        %919 = vxpose.xlu0.b32.cont [4/16] 0.0, 128
        %920 = vxpose.xlu0.b32.cont [5/16] 0.0, 128
        %921 = vxpose.xlu0.b32.cont [6/16] 0.0, 128
        %922 = vxpose.xlu0.b32.cont [7/16] 0.0, 128
        %923 = vxpose.xlu0.b32.cont [8/16] 0.0, 128
        %924 = vxpose.xlu0.b32.cont [9/16] 0.0, 128
        %925 = vxpose.xlu0.b32.cont [10/16] 0.0, 128
        %926 = vxpose.xlu0.b32.cont [11/16] 0.0, 128
        %927 = vxpose.xlu0.b32.cont [12/16] 0.0, 128
        %928 = vxpose.xlu0.b32.cont [13/16] 0.0, 128
        %929 = vxpose.xlu0.b32.cont [14/16] 0.0, 128
        %930 = vxpose.xlu0.b32.cont [15/16] 0.0, 128
        %931 = vxpose.xlu0.b32.end [16/16] 0.0, 128
        %v932 = vpop.trf.xlu0
        %v933 = vpop.trf.xlu0
        %v934 = vpop.trf.xlu0
        %v935 = vpop.trf.xlu0
        %v936 = vpop.trf.xlu0
        %v937 = vpop.trf.xlu0
        %v938 = vpop.trf.xlu0
        %v939 = vpop.trf.xlu0
        %v940 = vpop.trf.xlu0
        %v941 = vpop.trf.xlu0
        %v942 = vpop.trf.xlu0
        %v943 = vpop.trf.xlu0
        %v944 = vpop.trf.xlu0
        %v945 = vpop.trf.xlu0
        %v946 = vpop.trf.xlu0
        %v947 = vpop.trf.xlu0
        %948 = vxpose.xlu0.b32.start [1/16] %v602, 128
        %949 = vxpose.xlu0.b32.cont [2/16] 0.0, 128
        %950 = vxpose.xlu0.b32.cont [3/16] 0.0, 128
        %951 = vxpose.xlu0.b32.cont [4/16] 0.0, 128
        %952 = vxpose.xlu0.b32.cont [5/16] 0.0, 128
        %953 = vxpose.xlu0.b32.cont [6/16] 0.0, 128
        %954 = vxpose.xlu0.b32.cont [7/16] 0.0, 128
        %955 = vxpose.xlu0.b32.cont [8/16] 0.0, 128
        %956 = vxpose.xlu0.b32.cont [9/16] 0.0, 128
        %957 = vxpose.xlu0.b32.cont [10/16] 0.0, 128
        %958 = vxpose.xlu0.b32.cont [11/16] 0.0, 128
        %959 = vxpose.xlu0.b32.cont [12/16] 0.0, 128
        %960 = vxpose.xlu0.b32.cont [13/16] 0.0, 128
        %961 = vxpose.xlu0.b32.cont [14/16] 0.0, 128
        %962 = vxpose.xlu0.b32.cont [15/16] 0.0, 128
        %963 = vxpose.xlu0.b32.end [16/16] 0.0, 128
        %v964 = vpop.trf.xlu0
        %v965 = vpop.trf.xlu0
        %v966 = vpop.trf.xlu0
        %v967 = vpop.trf.xlu0
        %v968 = vpop.trf.xlu0
        %v969 = vpop.trf.xlu0
        %v970 = vpop.trf.xlu0
        %v971 = vpop.trf.xlu0
        %v972 = vpop.trf.xlu0
        %v973 = vpop.trf.xlu0
        %v974 = vpop.trf.xlu0
        %v975 = vpop.trf.xlu0
        %v976 = vpop.trf.xlu0
        %v977 = vpop.trf.xlu0
        %v978 = vpop.trf.xlu0
        %v979 = vpop.trf.xlu0
        %980 = vxpose.xlu0.b32.start [1/16] %v605, 128
        %981 = vxpose.xlu0.b32.cont [2/16] 0.0, 128
        %982 = vxpose.xlu0.b32.cont [3/16] 0.0, 128
        %983 = vxpose.xlu0.b32.cont [4/16] 0.0, 128
        %984 = vxpose.xlu0.b32.cont [5/16] 0.0, 128
        %985 = vxpose.xlu0.b32.cont [6/16] 0.0, 128
        %986 = vxpose.xlu0.b32.cont [7/16] 0.0, 128
        %987 = vxpose.xlu0.b32.cont [8/16] 0.0, 128
        %988 = vxpose.xlu0.b32.cont [9/16] 0.0, 128
        %989 = vxpose.xlu0.b32.cont [10/16] 0.0, 128
        %990 = vxpose.xlu0.b32.cont [11/16] 0.0, 128
        %991 = vxpose.xlu0.b32.cont [12/16] 0.0, 128
        %992 = vxpose.xlu0.b32.cont [13/16] 0.0, 128
        %993 = vxpose.xlu0.b32.cont [14/16] 0.0, 128
        %994 = vxpose.xlu0.b32.cont [15/16] 0.0, 128
        %995 = vxpose.xlu0.b32.end [16/16] 0.0, 128
        %v996 = vpop.trf.xlu0
        %v997 = vpop.trf.xlu0
        %v998 = vpop.trf.xlu0
        %v999 = vpop.trf.xlu0
        %v1000 = vpop.trf.xlu0
        %v1001 = vpop.trf.xlu0
        %v1002 = vpop.trf.xlu0
        %v1003 = vpop.trf.xlu0
        %v1004 = vpop.trf.xlu0
        %v1005 = vpop.trf.xlu0
        %v1006 = vpop.trf.xlu0
        %v1007 = vpop.trf.xlu0
        %v1008 = vpop.trf.xlu0
        %v1009 = vpop.trf.xlu0
        %v1010 = vpop.trf.xlu0
        %v1011 = vpop.trf.xlu0
        %v1012 = vpack.c.bf16 %v900, %v900
        %v1013 = vpack.c.bf16 %v901, %v901
        %v1014 = vpack.c.bf16 %v932, %v932
        %v1015 = vpack.c.bf16 %v933, %v933
        %v1016 = vpack.c.bf16 %v964, %v964
        %v1017 = vpack.c.bf16 %v965, %v965
        %v1018 = vpack.c.bf16 %v996, %v996
        %v1019 = vpack.c.bf16 %v997, %v997
        %vm1020 = vcmask 64512
        %v1022 = vsel %vm1020, %v740, 0
        %v1025 = vsel %vm1020, %v876, 0
        %1027 = vmatprep.subr.bf16.mxu0 0
        %1028 = vmatpush1.bf16.xpose.msra.mxu0 0
        %1029 = vmatprep.subr.bf16.mxu0 0
        %1030 = vmatpush1.bf16.xpose.msra.mxu0 0
        %1031 = vmatprep.subr.bf16.mxu0 0
        %1032 = vmatpush1.bf16.xpose.msra.mxu0 0
        %1033 = vmatprep.subr.bf16.mxu0 0
        %1034 = vmatpush1.bf16.xpose.msra.mxu0 0
        %1035 = vmatprep.subr.bf16.mxu0 0
        %1036 = vmatpush1.bf16.xpose.msra.mxu0 0
        %1037 = vmatprep.subr.bf16.mxu0 0
        %1038 = vmatpush1.bf16.xpose.msra.mxu0 0
        %1039 = vmatprep.subr.bf16.mxu0 0
        %1040 = vmatpush1.bf16.xpose.msra.mxu0 0
        %1041 = vmatprep.subr.bf16.mxu0 0
        %1042 = vmatpush1.bf16.xpose.msra.mxu0 %v1025
        %1043 = vmatprep.subr.bf16.mxu0 0
        %1044 = vmatpush2.bf16.xpose.msra.mxu0 0
        %1045 = vmatprep.subr.bf16.mxu0 0
        %1046 = vmatpush2.bf16.xpose.msra.mxu0 0
        %1047 = vmatprep.subr.bf16.mxu0 0
        %1048 = vmatpush2.bf16.xpose.msra.mxu0 0
        %1049 = vmatprep.subr.bf16.mxu0 0
        %1050 = vmatpush2.bf16.xpose.msra.mxu0 0
        %1051 = vmatprep.subr.bf16.mxu0 0
        %1052 = vmatpush2.bf16.xpose.msra.mxu0 0
        %1053 = vmatprep.subr.bf16.mxu0 0
        %1054 = vmatpush2.bf16.xpose.msra.mxu0 0
        %1055 = vmatprep.subr.bf16.mxu0 0
        %1056 = vmatpush2.bf16.xpose.msra.mxu0 0
        %1057 = vmatprep.subr.bf16.mxu0 0
        %1058 = vmatpush2.bf16.xpose.msra.mxu0 0
        %1059 = vmatprep.mubr.bf16.mxu0 0
        %1060 = vmatmul.mubr.bf16.gmra.mxu0 %v1022
        %v1061 = vpop.f32.mrf.mxu0
        %v1062 = vadd.f32 0.0, %v1061
        %v1063 = vpop.f32.mrf.mxu0
        %v1064 = vpop.f32.mrf.mxu0
        %v1065 = vpop.f32.mrf.mxu0
        %1066 = vdwg.mxu0
        %v1068 = vsel %vm1020, %v741, 0
        %v1071 = vsel %vm1020, %v877, 0
        %1073 = vmatprep.subr.bf16.mxu0 0
        %1074 = vmatpush1.bf16.xpose.msra.mxu0 0
        %1075 = vmatprep.subr.bf16.mxu0 0
        %1076 = vmatpush1.bf16.xpose.msra.mxu0 0
        %1077 = vmatprep.subr.bf16.mxu0 0
        %1078 = vmatpush1.bf16.xpose.msra.mxu0 0
        %1079 = vmatprep.subr.bf16.mxu0 0
        %1080 = vmatpush1.bf16.xpose.msra.mxu0 0
        %1081 = vmatprep.subr.bf16.mxu0 0
        %1082 = vmatpush1.bf16.xpose.msra.mxu0 0
        %1083 = vmatprep.subr.bf16.mxu0 0
        %1084 = vmatpush1.bf16.xpose.msra.mxu0 0
        %1085 = vmatprep.subr.bf16.mxu0 0
        %1086 = vmatpush1.bf16.xpose.msra.mxu0 0
        %1087 = vmatprep.subr.bf16.mxu0 0
        %1088 = vmatpush1.bf16.xpose.msra.mxu0 %v1071
        %1089 = vmatprep.subr.bf16.mxu0 0
        %1090 = vmatpush2.bf16.xpose.msra.mxu0 0
        %1091 = vmatprep.subr.bf16.mxu0 0
        %1092 = vmatpush2.bf16.xpose.msra.mxu0 0
        %1093 = vmatprep.subr.bf16.mxu0 0
        %1094 = vmatpush2.bf16.xpose.msra.mxu0 0
        %1095 = vmatprep.subr.bf16.mxu0 0
        %1096 = vmatpush2.bf16.xpose.msra.mxu0 0
        %1097 = vmatprep.subr.bf16.mxu0 0
        %1098 = vmatpush2.bf16.xpose.msra.mxu0 0
        %1099 = vmatprep.subr.bf16.mxu0 0
        %1100 = vmatpush2.bf16.xpose.msra.mxu0 0
        %1101 = vmatprep.subr.bf16.mxu0 0
        %1102 = vmatpush2.bf16.xpose.msra.mxu0 0
        %1103 = vmatprep.subr.bf16.mxu0 0
        %1104 = vmatpush2.bf16.xpose.msra.mxu0 0
        %1105 = vmatprep.mubr.bf16.mxu0 0
        %1106 = vmatmul.mubr.bf16.gmra.mxu0 %v1068
        %v1107 = vpop.f32.mrf.mxu0
        %v1108 = vadd.f32 0.0, %v1107
        %v1109 = vpop.f32.mrf.mxu0
        %v1110 = vpop.f32.mrf.mxu0
        %v1111 = vpop.f32.mrf.mxu0
        %1112 = vdwg.mxu0
        %v1114 = vsel %vm1020, %v742, 0
        %v1117 = vsel %vm1020, %v878, 0
        %1119 = vmatprep.subr.bf16.mxu0 0
        %1120 = vmatpush1.bf16.xpose.msra.mxu0 0
        %1121 = vmatprep.subr.bf16.mxu0 0
        %1122 = vmatpush1.bf16.xpose.msra.mxu0 0
        %1123 = vmatprep.subr.bf16.mxu0 0
        %1124 = vmatpush1.bf16.xpose.msra.mxu0 0
        %1125 = vmatprep.subr.bf16.mxu0 0
        %1126 = vmatpush1.bf16.xpose.msra.mxu0 0
        %1127 = vmatprep.subr.bf16.mxu0 0
        %1128 = vmatpush1.bf16.xpose.msra.mxu0 0
        %1129 = vmatprep.subr.bf16.mxu0 0
        %1130 = vmatpush1.bf16.xpose.msra.mxu0 0
        %1131 = vmatprep.subr.bf16.mxu0 0
        %1132 = vmatpush1.bf16.xpose.msra.mxu0 0
        %1133 = vmatprep.subr.bf16.mxu0 0
        %1134 = vmatpush1.bf16.xpose.msra.mxu0 %v1117
        %1135 = vmatprep.subr.bf16.mxu0 0
        %1136 = vmatpush2.bf16.xpose.msra.mxu0 0
        %1137 = vmatprep.subr.bf16.mxu0 0
        %1138 = vmatpush2.bf16.xpose.msra.mxu0 0
        %1139 = vmatprep.subr.bf16.mxu0 0
        %1140 = vmatpush2.bf16.xpose.msra.mxu0 0
        %1141 = vmatprep.subr.bf16.mxu0 0
        %1142 = vmatpush2.bf16.xpose.msra.mxu0 0
        %1143 = vmatprep.subr.bf16.mxu0 0
        %1144 = vmatpush2.bf16.xpose.msra.mxu0 0
        %1145 = vmatprep.subr.bf16.mxu0 0
        %1146 = vmatpush2.bf16.xpose.msra.mxu0 0
        %1147 = vmatprep.subr.bf16.mxu0 0
        %1148 = vmatpush2.bf16.xpose.msra.mxu0 0
        %1149 = vmatprep.subr.bf16.mxu0 0
        %1150 = vmatpush2.bf16.xpose.msra.mxu0 0
        %1151 = vmatprep.mubr.bf16.mxu0 0
        %1152 = vmatmul.mubr.bf16.gmra.mxu0 %v1114
        %v1153 = vpop.f32.mrf.mxu0
        %v1154 = vadd.f32 0.0, %v1153
        %v1155 = vpop.f32.mrf.mxu0
        %v1156 = vpop.f32.mrf.mxu0
        %v1157 = vpop.f32.mrf.mxu0
        %1158 = vdwg.mxu0
        %v1160 = vsel %vm1020, %v743, 0
        %v1163 = vsel %vm1020, %v879, 0
        %1165 = vmatprep.subr.bf16.mxu0 0
        %1166 = vmatpush1.bf16.xpose.msra.mxu0 0
        %1167 = vmatprep.subr.bf16.mxu0 0
        %1168 = vmatpush1.bf16.xpose.msra.mxu0 0
        %1169 = vmatprep.subr.bf16.mxu0 0
        %1170 = vmatpush1.bf16.xpose.msra.mxu0 0
        %1171 = vmatprep.subr.bf16.mxu0 0
        %1172 = vmatpush1.bf16.xpose.msra.mxu0 0
        %1173 = vmatprep.subr.bf16.mxu0 0
        %1174 = vmatpush1.bf16.xpose.msra.mxu0 0
        %1175 = vmatprep.subr.bf16.mxu0 0
        %1176 = vmatpush1.bf16.xpose.msra.mxu0 0
        %1177 = vmatprep.subr.bf16.mxu0 0
        %1178 = vmatpush1.bf16.xpose.msra.mxu0 0
        %1179 = vmatprep.subr.bf16.mxu0 0
        %1180 = vmatpush1.bf16.xpose.msra.mxu0 %v1163
        %1181 = vmatprep.subr.bf16.mxu0 0
        %1182 = vmatpush2.bf16.xpose.msra.mxu0 0
        %1183 = vmatprep.subr.bf16.mxu0 0
        %1184 = vmatpush2.bf16.xpose.msra.mxu0 0
        %1185 = vmatprep.subr.bf16.mxu0 0
        %1186 = vmatpush2.bf16.xpose.msra.mxu0 0
        %1187 = vmatprep.subr.bf16.mxu0 0
        %1188 = vmatpush2.bf16.xpose.msra.mxu0 0
        %1189 = vmatprep.subr.bf16.mxu0 0
        %1190 = vmatpush2.bf16.xpose.msra.mxu0 0
        %1191 = vmatprep.subr.bf16.mxu0 0
        %1192 = vmatpush2.bf16.xpose.msra.mxu0 0
        %1193 = vmatprep.subr.bf16.mxu0 0
        %1194 = vmatpush2.bf16.xpose.msra.mxu0 0
        %1195 = vmatprep.subr.bf16.mxu0 0
        %1196 = vmatpush2.bf16.xpose.msra.mxu0 0
        %1197 = vmatprep.mubr.bf16.mxu0 0
        %1198 = vmatmul.mubr.bf16.gmra.mxu0 %v1160
        %v1199 = vpop.f32.mrf.mxu0
        %v1200 = vadd.f32 0.0, %v1199
        %v1201 = vpop.f32.mrf.mxu0
        %v1202 = vpop.f32.mrf.mxu0
        %v1203 = vpop.f32.mrf.mxu0
        %1204 = vdwg.mxu0
        %v1206 = vsel %vm1020, %v744, 0
        %v1209 = vsel %vm1020, %v880, 0
        %1211 = vmatprep.subr.bf16.mxu0 0
        %1212 = vmatpush1.bf16.xpose.msra.mxu0 0
        %1213 = vmatprep.subr.bf16.mxu0 0
        %1214 = vmatpush1.bf16.xpose.msra.mxu0 0
        %1215 = vmatprep.subr.bf16.mxu0 0
        %1216 = vmatpush1.bf16.xpose.msra.mxu0 0
        %1217 = vmatprep.subr.bf16.mxu0 0
        %1218 = vmatpush1.bf16.xpose.msra.mxu0 0
        %1219 = vmatprep.subr.bf16.mxu0 0
        %1220 = vmatpush1.bf16.xpose.msra.mxu0 0
        %1221 = vmatprep.subr.bf16.mxu0 0
        %1222 = vmatpush1.bf16.xpose.msra.mxu0 0
        %1223 = vmatprep.subr.bf16.mxu0 0
        %1224 = vmatpush1.bf16.xpose.msra.mxu0 0
        %1225 = vmatprep.subr.bf16.mxu0 0
        %1226 = vmatpush1.bf16.xpose.msra.mxu0 %v1209
        %1227 = vmatprep.subr.bf16.mxu0 0
        %1228 = vmatpush2.bf16.xpose.msra.mxu0 0
        %1229 = vmatprep.subr.bf16.mxu0 0
        %1230 = vmatpush2.bf16.xpose.msra.mxu0 0
        %1231 = vmatprep.subr.bf16.mxu0 0
        %1232 = vmatpush2.bf16.xpose.msra.mxu0 0
        %1233 = vmatprep.subr.bf16.mxu0 0
        %1234 = vmatpush2.bf16.xpose.msra.mxu0 0
        %1235 = vmatprep.subr.bf16.mxu0 0
        %1236 = vmatpush2.bf16.xpose.msra.mxu0 0
        %1237 = vmatprep.subr.bf16.mxu0 0
        %1238 = vmatpush2.bf16.xpose.msra.mxu0 0
        %1239 = vmatprep.subr.bf16.mxu0 0
        %1240 = vmatpush2.bf16.xpose.msra.mxu0 0
        %1241 = vmatprep.subr.bf16.mxu0 0
        %1242 = vmatpush2.bf16.xpose.msra.mxu0 0
        %1243 = vmatprep.mubr.bf16.mxu0 0
        %1244 = vmatmul.mubr.bf16.gmra.mxu0 %v1206
        %v1245 = vpop.f32.mrf.mxu0
        %v1246 = vadd.f32 0.0, %v1245
        %v1247 = vpop.f32.mrf.mxu0
        %v1248 = vpop.f32.mrf.mxu0
        %v1249 = vpop.f32.mrf.mxu0
        %1250 = vdwg.mxu0
        %v1252 = vsel %vm1020, %v745, 0
        %v1255 = vsel %vm1020, %v881, 0
        %1257 = vmatprep.subr.bf16.mxu0 0
        %1258 = vmatpush1.bf16.xpose.msra.mxu0 0
        %1259 = vmatprep.subr.bf16.mxu0 0
        %1260 = vmatpush1.bf16.xpose.msra.mxu0 0
        %1261 = vmatprep.subr.bf16.mxu0 0
        %1262 = vmatpush1.bf16.xpose.msra.mxu0 0
        %1263 = vmatprep.subr.bf16.mxu0 0
        %1264 = vmatpush1.bf16.xpose.msra.mxu0 0
        %1265 = vmatprep.subr.bf16.mxu0 0
        %1266 = vmatpush1.bf16.xpose.msra.mxu0 0
        %1267 = vmatprep.subr.bf16.mxu0 0
        %1268 = vmatpush1.bf16.xpose.msra.mxu0 0
        %1269 = vmatprep.subr.bf16.mxu0 0
        %1270 = vmatpush1.bf16.xpose.msra.mxu0 0
        %1271 = vmatprep.subr.bf16.mxu0 0
        %1272 = vmatpush1.bf16.xpose.msra.mxu0 %v1255
        %1273 = vmatprep.subr.bf16.mxu0 0
        %1274 = vmatpush2.bf16.xpose.msra.mxu0 0
        %1275 = vmatprep.subr.bf16.mxu0 0
        %1276 = vmatpush2.bf16.xpose.msra.mxu0 0
        %1277 = vmatprep.subr.bf16.mxu0 0
        %1278 = vmatpush2.bf16.xpose.msra.mxu0 0
        %1279 = vmatprep.subr.bf16.mxu0 0
        %1280 = vmatpush2.bf16.xpose.msra.mxu0 0
        %1281 = vmatprep.subr.bf16.mxu0 0
        %1282 = vmatpush2.bf16.xpose.msra.mxu0 0
        %1283 = vmatprep.subr.bf16.mxu0 0
        %1284 = vmatpush2.bf16.xpose.msra.mxu0 0
        %1285 = vmatprep.subr.bf16.mxu0 0
        %1286 = vmatpush2.bf16.xpose.msra.mxu0 0
        %1287 = vmatprep.subr.bf16.mxu0 0
        %1288 = vmatpush2.bf16.xpose.msra.mxu0 0
        %1289 = vmatprep.mubr.bf16.mxu0 0
        %1290 = vmatmul.mubr.bf16.gmra.mxu0 %v1252
        %v1291 = vpop.f32.mrf.mxu0
        %v1292 = vadd.f32 0.0, %v1291
        %v1293 = vpop.f32.mrf.mxu0
        %v1294 = vpop.f32.mrf.mxu0
        %v1295 = vpop.f32.mrf.mxu0
        %1296 = vdwg.mxu0
        %v1298 = vsel %vm1020, %v746, 0
        %v1301 = vsel %vm1020, %v882, 0
        %1303 = vmatprep.subr.bf16.mxu0 0
        %1304 = vmatpush1.bf16.xpose.msra.mxu0 0
        %1305 = vmatprep.subr.bf16.mxu0 0
        %1306 = vmatpush1.bf16.xpose.msra.mxu0 0
        %1307 = vmatprep.subr.bf16.mxu0 0
        %1308 = vmatpush1.bf16.xpose.msra.mxu0 0
        %1309 = vmatprep.subr.bf16.mxu0 0
        %1310 = vmatpush1.bf16.xpose.msra.mxu0 0
        %1311 = vmatprep.subr.bf16.mxu0 0
        %1312 = vmatpush1.bf16.xpose.msra.mxu0 0
        %1313 = vmatprep.subr.bf16.mxu0 0
        %1314 = vmatpush1.bf16.xpose.msra.mxu0 0
        %1315 = vmatprep.subr.bf16.mxu0 0
        %1316 = vmatpush1.bf16.xpose.msra.mxu0 0
        %1317 = vmatprep.subr.bf16.mxu0 0
        %1318 = vmatpush1.bf16.xpose.msra.mxu0 %v1301
        %1319 = vmatprep.subr.bf16.mxu0 0
        %1320 = vmatpush2.bf16.xpose.msra.mxu0 0
        %1321 = vmatprep.subr.bf16.mxu0 0
        %1322 = vmatpush2.bf16.xpose.msra.mxu0 0
        %1323 = vmatprep.subr.bf16.mxu0 0
        %1324 = vmatpush2.bf16.xpose.msra.mxu0 0
        %1325 = vmatprep.subr.bf16.mxu0 0
        %1326 = vmatpush2.bf16.xpose.msra.mxu0 0
        %1327 = vmatprep.subr.bf16.mxu0 0
        %1328 = vmatpush2.bf16.xpose.msra.mxu0 0
        %1329 = vmatprep.subr.bf16.mxu0 0
        %1330 = vmatpush2.bf16.xpose.msra.mxu0 0
        %1331 = vmatprep.subr.bf16.mxu0 0
        %1332 = vmatpush2.bf16.xpose.msra.mxu0 0
        %1333 = vmatprep.subr.bf16.mxu0 0
        %1334 = vmatpush2.bf16.xpose.msra.mxu0 0
        %1335 = vmatprep.mubr.bf16.mxu0 0
        %1336 = vmatmul.mubr.bf16.gmra.mxu0 %v1298
        %v1337 = vpop.f32.mrf.mxu0
        %v1338 = vadd.f32 0.0, %v1337
        %v1339 = vpop.f32.mrf.mxu0
        %v1340 = vpop.f32.mrf.mxu0
        %v1341 = vpop.f32.mrf.mxu0
        %1342 = vdwg.mxu0
        %v1344 = vsel %vm1020, %v747, 0
        %v1347 = vsel %vm1020, %v883, 0
        %1349 = vmatprep.subr.bf16.mxu0 0
        %1350 = vmatpush1.bf16.xpose.msra.mxu0 0
        %1351 = vmatprep.subr.bf16.mxu0 0
        %1352 = vmatpush1.bf16.xpose.msra.mxu0 0
        %1353 = vmatprep.subr.bf16.mxu0 0
        %1354 = vmatpush1.bf16.xpose.msra.mxu0 0
        %1355 = vmatprep.subr.bf16.mxu0 0
        %1356 = vmatpush1.bf16.xpose.msra.mxu0 0
        %1357 = vmatprep.subr.bf16.mxu0 0
        %1358 = vmatpush1.bf16.xpose.msra.mxu0 0
        %1359 = vmatprep.subr.bf16.mxu0 0
        %1360 = vmatpush1.bf16.xpose.msra.mxu0 0
        %1361 = vmatprep.subr.bf16.mxu0 0
        %1362 = vmatpush1.bf16.xpose.msra.mxu0 0
        %1363 = vmatprep.subr.bf16.mxu0 0
        %1364 = vmatpush1.bf16.xpose.msra.mxu0 %v1347
        %1365 = vmatprep.subr.bf16.mxu0 0
        %1366 = vmatpush2.bf16.xpose.msra.mxu0 0
        %1367 = vmatprep.subr.bf16.mxu0 0
        %1368 = vmatpush2.bf16.xpose.msra.mxu0 0
        %1369 = vmatprep.subr.bf16.mxu0 0
        %1370 = vmatpush2.bf16.xpose.msra.mxu0 0
        %1371 = vmatprep.subr.bf16.mxu0 0
        %1372 = vmatpush2.bf16.xpose.msra.mxu0 0
        %1373 = vmatprep.subr.bf16.mxu0 0
        %1374 = vmatpush2.bf16.xpose.msra.mxu0 0
        %1375 = vmatprep.subr.bf16.mxu0 0
        %1376 = vmatpush2.bf16.xpose.msra.mxu0 0
        %1377 = vmatprep.subr.bf16.mxu0 0
        %1378 = vmatpush2.bf16.xpose.msra.mxu0 0
        %1379 = vmatprep.subr.bf16.mxu0 0
        %1380 = vmatpush2.bf16.xpose.msra.mxu0 0
        %1381 = vmatprep.mubr.bf16.mxu0 0
        %1382 = vmatmul.mubr.bf16.gmra.mxu0 %v1344
        %v1383 = vpop.f32.mrf.mxu0
        %v1384 = vadd.f32 0.0, %v1383
        %v1385 = vpop.f32.mrf.mxu0
        %v1386 = vpop.f32.mrf.mxu0
        %v1387 = vpop.f32.mrf.mxu0
        %1388 = vdwg.mxu0
        %v1389 = vsel %vm1020, %v1062, -inf
        %1390 = vmax.xlane.f32.xlu0 %v1389
        %v1391 = vpop.xlane.xlu0 %1390
        %v1392 = vsel %vm1020, %v1108, -inf
        %1393 = vmax.xlane.f32.xlu0 %v1392
        %v1394 = vpop.xlane.xlu0 %1393
        %v1395 = vsel %vm1020, %v1154, -inf
        %1396 = vmax.xlane.f32.xlu0 %v1395
        %v1397 = vpop.xlane.xlu0 %1396
        %v1398 = vsel %vm1020, %v1200, -inf
        %1399 = vmax.xlane.f32.xlu0 %v1398
        %v1400 = vpop.xlane.xlu0 %1399
        %v1401 = vsel %vm1020, %v1246, -inf
        %1402 = vmax.xlane.f32.xlu0 %v1401
        %v1403 = vpop.xlane.xlu0 %1402
        %v1404 = vsel %vm1020, %v1292, -inf
        %1405 = vmax.xlane.f32.xlu0 %v1404
        %v1406 = vpop.xlane.xlu0 %1405
        %v1407 = vsel %vm1020, %v1338, -inf
        %1408 = vmax.xlane.f32.xlu0 %v1407
        %v1409 = vpop.xlane.xlu0 %1408
        %v1410 = vsel %vm1020, %v1384, -inf
        %1411 = vmax.xlane.f32.xlu0 %v1410
        %v1412 = vpop.xlane.xlu0 %1411
        %v1413 = vsub.f32 %v1062, %v1391
        %v1414 = vsub.f32 %v1108, %v1394
        %v1415 = vsub.f32 %v1154, %v1397
        %v1416 = vsub.f32 %v1200, %v1400
        %v1417 = vsub.f32 %v1246, %v1403
        %v1418 = vsub.f32 %v1292, %v1406
        %v1419 = vsub.f32 %v1338, %v1409
        %v1420 = vsub.f32 %v1384, %v1412
        %v1421 = vmul.f32 %v1413, 1.442695
        %v1422 = vpow.pop %v1421
        %v1423 = vmul.f32 %v1414, 1.442695
        %v1424 = vpow.pop %v1423
        %v1425 = vmul.f32 %v1415, 1.442695
        %v1426 = vpow.pop %v1425
        %v1427 = vmul.f32 %v1416, 1.442695
        %v1428 = vpow.pop %v1427
        %v1429 = vmul.f32 %v1417, 1.442695
        %v1430 = vpow.pop %v1429
        %v1431 = vmul.f32 %v1418, 1.442695
        %v1432 = vpow.pop %v1431
        %v1433 = vmul.f32 %v1419, 1.442695
        %v1434 = vpow.pop %v1433
        %v1435 = vmul.f32 %v1420, 1.442695
        %v1436 = vpow.pop %v1435
        %v1437 = vsel %vm1020, %v1422, 0.0
        %1438 = vadd.xlane.f32.xlu0 %v1437
        %v1439 = vpop.xlane.xlu0 %1438
        %v1440 = vsel %vm1020, %v1424, 0.0
        %1441 = vadd.xlane.f32.xlu0 %v1440
        %v1442 = vpop.xlane.xlu0 %1441
        %v1443 = vsel %vm1020, %v1426, 0.0
        %1444 = vadd.xlane.f32.xlu0 %v1443
        %v1445 = vpop.xlane.xlu0 %1444
        %v1446 = vsel %vm1020, %v1428, 0.0
        %1447 = vadd.xlane.f32.xlu0 %v1446
        %v1448 = vpop.xlane.xlu0 %1447
        %v1449 = vsel %vm1020, %v1430, 0.0
        %1450 = vadd.xlane.f32.xlu0 %v1449
        %v1451 = vpop.xlane.xlu0 %1450
        %v1452 = vsel %vm1020, %v1432, 0.0
        %1453 = vadd.xlane.f32.xlu0 %v1452
        %v1454 = vpop.xlane.xlu0 %1453
        %v1455 = vsel %vm1020, %v1434, 0.0
        %1456 = vadd.xlane.f32.xlu0 %v1455
        %v1457 = vpop.xlane.xlu0 %1456
        %v1458 = vsel %vm1020, %v1436, 0.0
        %1459 = vadd.xlane.f32.xlu0 %v1458
        %v1460 = vpop.xlane.xlu0 %1459
        %v1461 = vrcp.pop %v1439
        %v1462 = vrcp.pop %v1442
        %v1463 = vrcp.pop %v1445
        %v1464 = vrcp.pop %v1448
        %v1465 = vrcp.pop %v1451
        %v1466 = vrcp.pop %v1454
        %v1467 = vrcp.pop %v1457
        %v1468 = vrcp.pop %v1460
        %v1469 = vmul.f32 %v1422, %v1461
        %v1470 = vmul.f32 %v1424, %v1462
        %v1471 = vmul.f32 %v1426, %v1463
        %v1472 = vmul.f32 %v1428, %v1464
        %v1473 = vmul.f32 %v1430, %v1465
        %v1474 = vmul.f32 %v1432, %v1466
        %v1475 = vmul.f32 %v1434, %v1467
        %v1476 = vmul.f32 %v1436, %v1468
        %v1477 = vpack.c.bf16 %v1469, %v1469
        %v1478 = vpack.c.bf16 %v1470, %v1470
        %v1479 = vpack.c.bf16 %v1471, %v1471
        %v1480 = vpack.c.bf16 %v1472, %v1472
        %v1481 = vpack.c.bf16 %v1473, %v1473
        %v1482 = vpack.c.bf16 %v1474, %v1474
        %v1483 = vpack.c.bf16 %v1475, %v1475
        %v1484 = vpack.c.bf16 %v1476, %v1476
        %v1486 = vsel %vm1020, %v1477, 0
        %vm1488 = vcmask 1043456
        %v1490 = vsel %vm1488, %v1012, 0
        %1492 = vmatprep.subr.bf16.mxu0 0
        %1493 = vmatpush1.bf16.msra.mxu0 0
        %1494 = vmatprep.subr.bf16.mxu0 0
        %1495 = vmatpush1.bf16.msra.mxu0 0
        %1496 = vmatprep.subr.bf16.mxu0 0
        %1497 = vmatpush1.bf16.msra.mxu0 0
        %1498 = vmatprep.subr.bf16.mxu0 0
        %1499 = vmatpush1.bf16.msra.mxu0 0
        %1500 = vmatprep.subr.bf16.mxu0 0
        %1501 = vmatpush1.bf16.msra.mxu0 0
        %1502 = vmatprep.subr.bf16.mxu0 0
        %1503 = vmatpush1.bf16.msra.mxu0 0
        %1504 = vmatprep.subr.bf16.mxu0 0
        %1505 = vmatpush1.bf16.msra.mxu0 0
        %1506 = vmatprep.subr.bf16.mxu0 0
        %1507 = vmatpush1.bf16.msra.mxu0 %v1490
        %1508 = vmatprep.subr.bf16.mxu0 0
        %1509 = vmatpush2.bf16.msra.mxu0 0
        %1510 = vmatprep.subr.bf16.mxu0 0
        %1511 = vmatpush2.bf16.msra.mxu0 0
        %1512 = vmatprep.subr.bf16.mxu0 0
        %1513 = vmatpush2.bf16.msra.mxu0 0
        %1514 = vmatprep.subr.bf16.mxu0 0
        %1515 = vmatpush2.bf16.msra.mxu0 0
        %1516 = vmatprep.subr.bf16.mxu0 0
        %1517 = vmatpush2.bf16.msra.mxu0 0
        %1518 = vmatprep.subr.bf16.mxu0 0
        %1519 = vmatpush2.bf16.msra.mxu0 0
        %1520 = vmatprep.subr.bf16.mxu0 0
        %1521 = vmatpush2.bf16.msra.mxu0 0
        %1522 = vmatprep.subr.bf16.mxu0 0
        %1523 = vmatpush2.bf16.msra.mxu0 0
        %1524 = vmatprep.mubr.bf16.mxu0 0
        %1525 = vmatmul.mubr.bf16.gmra.mxu0 %v1486
        %v1526 = vpop.f32.mrf.mxu0
        %v1527 = vadd.f32 0.0, %v1526
        %v1528 = vpop.f32.mrf.mxu0
        %v1529 = vpop.f32.mrf.mxu0
        %v1530 = vpop.f32.mrf.mxu0
        %1531 = vdwg.mxu0
        %v1533 = vsel %vm1020, %v1478, 0
        %v1536 = vsel %vm1488, %v1013, 0
        %1538 = vmatprep.subr.bf16.mxu0 0
        %1539 = vmatpush1.bf16.msra.mxu0 0
        %1540 = vmatprep.subr.bf16.mxu0 0
        %1541 = vmatpush1.bf16.msra.mxu0 0
        %1542 = vmatprep.subr.bf16.mxu0 0
        %1543 = vmatpush1.bf16.msra.mxu0 0
        %1544 = vmatprep.subr.bf16.mxu0 0
        %1545 = vmatpush1.bf16.msra.mxu0 0
        %1546 = vmatprep.subr.bf16.mxu0 0
        %1547 = vmatpush1.bf16.msra.mxu0 0
        %1548 = vmatprep.subr.bf16.mxu0 0
        %1549 = vmatpush1.bf16.msra.mxu0 0
        %1550 = vmatprep.subr.bf16.mxu0 0
        %1551 = vmatpush1.bf16.msra.mxu0 0
        %1552 = vmatprep.subr.bf16.mxu0 0
        %1553 = vmatpush1.bf16.msra.mxu0 %v1536
        %1554 = vmatprep.subr.bf16.mxu0 0
        %1555 = vmatpush2.bf16.msra.mxu0 0
        %1556 = vmatprep.subr.bf16.mxu0 0
        %1557 = vmatpush2.bf16.msra.mxu0 0
        %1558 = vmatprep.subr.bf16.mxu0 0
        %1559 = vmatpush2.bf16.msra.mxu0 0
        %1560 = vmatprep.subr.bf16.mxu0 0
        %1561 = vmatpush2.bf16.msra.mxu0 0
        %1562 = vmatprep.subr.bf16.mxu0 0
        %1563 = vmatpush2.bf16.msra.mxu0 0
        %1564 = vmatprep.subr.bf16.mxu0 0
        %1565 = vmatpush2.bf16.msra.mxu0 0
        %1566 = vmatprep.subr.bf16.mxu0 0
        %1567 = vmatpush2.bf16.msra.mxu0 0
        %1568 = vmatprep.subr.bf16.mxu0 0
        %1569 = vmatpush2.bf16.msra.mxu0 0
        %1570 = vmatprep.mubr.bf16.mxu0 0
        %1571 = vmatmul.mubr.bf16.gmra.mxu0 %v1533
        %v1572 = vpop.f32.mrf.mxu0
        %v1573 = vadd.f32 0.0, %v1572
        %v1574 = vpop.f32.mrf.mxu0
        %v1575 = vpop.f32.mrf.mxu0
        %v1576 = vpop.f32.mrf.mxu0
        %1577 = vdwg.mxu0
        %v1579 = vsel %vm1020, %v1479, 0
        %v1582 = vsel %vm1488, %v1014, 0
        %1584 = vmatprep.subr.bf16.mxu0 0
        %1585 = vmatpush1.bf16.msra.mxu0 0
        %1586 = vmatprep.subr.bf16.mxu0 0
        %1587 = vmatpush1.bf16.msra.mxu0 0
        %1588 = vmatprep.subr.bf16.mxu0 0
        %1589 = vmatpush1.bf16.msra.mxu0 0
        %1590 = vmatprep.subr.bf16.mxu0 0
        %1591 = vmatpush1.bf16.msra.mxu0 0
        %1592 = vmatprep.subr.bf16.mxu0 0
        %1593 = vmatpush1.bf16.msra.mxu0 0
        %1594 = vmatprep.subr.bf16.mxu0 0
        %1595 = vmatpush1.bf16.msra.mxu0 0
        %1596 = vmatprep.subr.bf16.mxu0 0
        %1597 = vmatpush1.bf16.msra.mxu0 0
        %1598 = vmatprep.subr.bf16.mxu0 0
        %1599 = vmatpush1.bf16.msra.mxu0 %v1582
        %1600 = vmatprep.subr.bf16.mxu0 0
        %1601 = vmatpush2.bf16.msra.mxu0 0
        %1602 = vmatprep.subr.bf16.mxu0 0
        %1603 = vmatpush2.bf16.msra.mxu0 0
        %1604 = vmatprep.subr.bf16.mxu0 0
        %1605 = vmatpush2.bf16.msra.mxu0 0
        %1606 = vmatprep.subr.bf16.mxu0 0
        %1607 = vmatpush2.bf16.msra.mxu0 0
        %1608 = vmatprep.subr.bf16.mxu0 0
        %1609 = vmatpush2.bf16.msra.mxu0 0
        %1610 = vmatprep.subr.bf16.mxu0 0
        %1611 = vmatpush2.bf16.msra.mxu0 0
        %1612 = vmatprep.subr.bf16.mxu0 0
        %1613 = vmatpush2.bf16.msra.mxu0 0
        %1614 = vmatprep.subr.bf16.mxu0 0
        %1615 = vmatpush2.bf16.msra.mxu0 0
        %1616 = vmatprep.mubr.bf16.mxu0 0
        %1617 = vmatmul.mubr.bf16.gmra.mxu0 %v1579
        %v1618 = vpop.f32.mrf.mxu0
        %v1619 = vadd.f32 0.0, %v1618
        %v1620 = vpop.f32.mrf.mxu0
        %v1621 = vpop.f32.mrf.mxu0
        %v1622 = vpop.f32.mrf.mxu0
        %1623 = vdwg.mxu0
        %v1625 = vsel %vm1020, %v1480, 0
        %v1628 = vsel %vm1488, %v1015, 0
        %1630 = vmatprep.subr.bf16.mxu0 0
        %1631 = vmatpush1.bf16.msra.mxu0 0
        %1632 = vmatprep.subr.bf16.mxu0 0
        %1633 = vmatpush1.bf16.msra.mxu0 0
        %1634 = vmatprep.subr.bf16.mxu0 0
        %1635 = vmatpush1.bf16.msra.mxu0 0
        %1636 = vmatprep.subr.bf16.mxu0 0
        %1637 = vmatpush1.bf16.msra.mxu0 0
        %1638 = vmatprep.subr.bf16.mxu0 0
        %1639 = vmatpush1.bf16.msra.mxu0 0
        %1640 = vmatprep.subr.bf16.mxu0 0
        %1641 = vmatpush1.bf16.msra.mxu0 0
        %1642 = vmatprep.subr.bf16.mxu0 0
        %1643 = vmatpush1.bf16.msra.mxu0 0
        %1644 = vmatprep.subr.bf16.mxu0 0
        %1645 = vmatpush1.bf16.msra.mxu0 %v1628
        %1646 = vmatprep.subr.bf16.mxu0 0
        %1647 = vmatpush2.bf16.msra.mxu0 0
        %1648 = vmatprep.subr.bf16.mxu0 0
        %1649 = vmatpush2.bf16.msra.mxu0 0
        %1650 = vmatprep.subr.bf16.mxu0 0
        %1651 = vmatpush2.bf16.msra.mxu0 0
        %1652 = vmatprep.subr.bf16.mxu0 0
        %1653 = vmatpush2.bf16.msra.mxu0 0
        %1654 = vmatprep.subr.bf16.mxu0 0
        %1655 = vmatpush2.bf16.msra.mxu0 0
        %1656 = vmatprep.subr.bf16.mxu0 0
        %1657 = vmatpush2.bf16.msra.mxu0 0
        %1658 = vmatprep.subr.bf16.mxu0 0
        %1659 = vmatpush2.bf16.msra.mxu0 0
        %1660 = vmatprep.subr.bf16.mxu0 0
        %1661 = vmatpush2.bf16.msra.mxu0 0
        %1662 = vmatprep.mubr.bf16.mxu0 0
        %1663 = vmatmul.mubr.bf16.gmra.mxu0 %v1625
        %v1664 = vpop.f32.mrf.mxu0
        %v1665 = vadd.f32 0.0, %v1664
        %v1666 = vpop.f32.mrf.mxu0
        %v1667 = vpop.f32.mrf.mxu0
        %v1668 = vpop.f32.mrf.mxu0
        %1669 = vdwg.mxu0
        %v1671 = vsel %vm1020, %v1481, 0
        %v1674 = vsel %vm1488, %v1016, 0
        %1676 = vmatprep.subr.bf16.mxu0 0
        %1677 = vmatpush1.bf16.msra.mxu0 0
        %1678 = vmatprep.subr.bf16.mxu0 0
        %1679 = vmatpush1.bf16.msra.mxu0 0
        %1680 = vmatprep.subr.bf16.mxu0 0
        %1681 = vmatpush1.bf16.msra.mxu0 0
        %1682 = vmatprep.subr.bf16.mxu0 0
        %1683 = vmatpush1.bf16.msra.mxu0 0
        %1684 = vmatprep.subr.bf16.mxu0 0
        %1685 = vmatpush1.bf16.msra.mxu0 0
        %1686 = vmatprep.subr.bf16.mxu0 0
        %1687 = vmatpush1.bf16.msra.mxu0 0
        %1688 = vmatprep.subr.bf16.mxu0 0
        %1689 = vmatpush1.bf16.msra.mxu0 0
        %1690 = vmatprep.subr.bf16.mxu0 0
        %1691 = vmatpush1.bf16.msra.mxu0 %v1674
        %1692 = vmatprep.subr.bf16.mxu0 0
        %1693 = vmatpush2.bf16.msra.mxu0 0
        %1694 = vmatprep.subr.bf16.mxu0 0
        %1695 = vmatpush2.bf16.msra.mxu0 0
        %1696 = vmatprep.subr.bf16.mxu0 0
        %1697 = vmatpush2.bf16.msra.mxu0 0
        %1698 = vmatprep.subr.bf16.mxu0 0
        %1699 = vmatpush2.bf16.msra.mxu0 0
        %1700 = vmatprep.subr.bf16.mxu0 0
        %1701 = vmatpush2.bf16.msra.mxu0 0
        %1702 = vmatprep.subr.bf16.mxu0 0
        %1703 = vmatpush2.bf16.msra.mxu0 0
        %1704 = vmatprep.subr.bf16.mxu0 0
        %1705 = vmatpush2.bf16.msra.mxu0 0
        %1706 = vmatprep.subr.bf16.mxu0 0
        %1707 = vmatpush2.bf16.msra.mxu0 0
        %1708 = vmatprep.mubr.bf16.mxu0 0
        %1709 = vmatmul.mubr.bf16.gmra.mxu0 %v1671
        %v1710 = vpop.f32.mrf.mxu0
        %v1711 = vadd.f32 0.0, %v1710
        %v1712 = vpop.f32.mrf.mxu0
        %v1713 = vpop.f32.mrf.mxu0
        %v1714 = vpop.f32.mrf.mxu0
        %1715 = vdwg.mxu0
        %v1717 = vsel %vm1020, %v1482, 0
        %v1720 = vsel %vm1488, %v1017, 0
        %1722 = vmatprep.subr.bf16.mxu0 0
        %1723 = vmatpush1.bf16.msra.mxu0 0
        %1724 = vmatprep.subr.bf16.mxu0 0
        %1725 = vmatpush1.bf16.msra.mxu0 0
        %1726 = vmatprep.subr.bf16.mxu0 0
        %1727 = vmatpush1.bf16.msra.mxu0 0
        %1728 = vmatprep.subr.bf16.mxu0 0
        %1729 = vmatpush1.bf16.msra.mxu0 0
        %1730 = vmatprep.subr.bf16.mxu0 0
        %1731 = vmatpush1.bf16.msra.mxu0 0
        %1732 = vmatprep.subr.bf16.mxu0 0
        %1733 = vmatpush1.bf16.msra.mxu0 0
        %1734 = vmatprep.subr.bf16.mxu0 0
        %1735 = vmatpush1.bf16.msra.mxu0 0
        %1736 = vmatprep.subr.bf16.mxu0 0
        %1737 = vmatpush1.bf16.msra.mxu0 %v1720
        %1738 = vmatprep.subr.bf16.mxu0 0
        %1739 = vmatpush2.bf16.msra.mxu0 0
        %1740 = vmatprep.subr.bf16.mxu0 0
        %1741 = vmatpush2.bf16.msra.mxu0 0
        %1742 = vmatprep.subr.bf16.mxu0 0
        %1743 = vmatpush2.bf16.msra.mxu0 0
        %1744 = vmatprep.subr.bf16.mxu0 0
        %1745 = vmatpush2.bf16.msra.mxu0 0
        %1746 = vmatprep.subr.bf16.mxu0 0
        %1747 = vmatpush2.bf16.msra.mxu0 0
        %1748 = vmatprep.subr.bf16.mxu0 0
        %1749 = vmatpush2.bf16.msra.mxu0 0
        %1750 = vmatprep.subr.bf16.mxu0 0
        %1751 = vmatpush2.bf16.msra.mxu0 0
        %1752 = vmatprep.subr.bf16.mxu0 0
        %1753 = vmatpush2.bf16.msra.mxu0 0
        %1754 = vmatprep.mubr.bf16.mxu0 0
        %1755 = vmatmul.mubr.bf16.gmra.mxu0 %v1717
        %v1756 = vpop.f32.mrf.mxu0
        %v1757 = vadd.f32 0.0, %v1756
        %v1758 = vpop.f32.mrf.mxu0
        %v1759 = vpop.f32.mrf.mxu0
        %v1760 = vpop.f32.mrf.mxu0
        %1761 = vdwg.mxu0
        %v1763 = vsel %vm1020, %v1483, 0
        %v1766 = vsel %vm1488, %v1018, 0
        %1768 = vmatprep.subr.bf16.mxu0 0
        %1769 = vmatpush1.bf16.msra.mxu0 0
        %1770 = vmatprep.subr.bf16.mxu0 0
        %1771 = vmatpush1.bf16.msra.mxu0 0
        %1772 = vmatprep.subr.bf16.mxu0 0
        %1773 = vmatpush1.bf16.msra.mxu0 0
        %1774 = vmatprep.subr.bf16.mxu0 0
        %1775 = vmatpush1.bf16.msra.mxu0 0
        %1776 = vmatprep.subr.bf16.mxu0 0
        %1777 = vmatpush1.bf16.msra.mxu0 0
        %1778 = vmatprep.subr.bf16.mxu0 0
        %1779 = vmatpush1.bf16.msra.mxu0 0
        %1780 = vmatprep.subr.bf16.mxu0 0
        %1781 = vmatpush1.bf16.msra.mxu0 0
        %1782 = vmatprep.subr.bf16.mxu0 0
        %1783 = vmatpush1.bf16.msra.mxu0 %v1766
        %1784 = vmatprep.subr.bf16.mxu0 0
        %1785 = vmatpush2.bf16.msra.mxu0 0
        %1786 = vmatprep.subr.bf16.mxu0 0
        %1787 = vmatpush2.bf16.msra.mxu0 0
        %1788 = vmatprep.subr.bf16.mxu0 0
        %1789 = vmatpush2.bf16.msra.mxu0 0
        %1790 = vmatprep.subr.bf16.mxu0 0
        %1791 = vmatpush2.bf16.msra.mxu0 0
        %1792 = vmatprep.subr.bf16.mxu0 0
        %1793 = vmatpush2.bf16.msra.mxu0 0
        %1794 = vmatprep.subr.bf16.mxu0 0
        %1795 = vmatpush2.bf16.msra.mxu0 0
        %1796 = vmatprep.subr.bf16.mxu0 0
        %1797 = vmatpush2.bf16.msra.mxu0 0
        %1798 = vmatprep.subr.bf16.mxu0 0
        %1799 = vmatpush2.bf16.msra.mxu0 0
        %1800 = vmatprep.mubr.bf16.mxu0 0
        %1801 = vmatmul.mubr.bf16.gmra.mxu0 %v1763
        %v1802 = vpop.f32.mrf.mxu0
        %v1803 = vadd.f32 0.0, %v1802
        %v1804 = vpop.f32.mrf.mxu0
        %v1805 = vpop.f32.mrf.mxu0
        %v1806 = vpop.f32.mrf.mxu0
        %1807 = vdwg.mxu0
        %v1809 = vsel %vm1020, %v1484, 0
        %v1812 = vsel %vm1488, %v1019, 0
        %1814 = vmatprep.subr.bf16.mxu0 0
        %1815 = vmatpush1.bf16.msra.mxu0 0
        %1816 = vmatprep.subr.bf16.mxu0 0
        %1817 = vmatpush1.bf16.msra.mxu0 0
        %1818 = vmatprep.subr.bf16.mxu0 0
        %1819 = vmatpush1.bf16.msra.mxu0 0
        %1820 = vmatprep.subr.bf16.mxu0 0
        %1821 = vmatpush1.bf16.msra.mxu0 0
        %1822 = vmatprep.subr.bf16.mxu0 0
        %1823 = vmatpush1.bf16.msra.mxu0 0
        %1824 = vmatprep.subr.bf16.mxu0 0
        %1825 = vmatpush1.bf16.msra.mxu0 0
        %1826 = vmatprep.subr.bf16.mxu0 0
        %1827 = vmatpush1.bf16.msra.mxu0 0
        %1828 = vmatprep.subr.bf16.mxu0 0
        %1829 = vmatpush1.bf16.msra.mxu0 %v1812
        %1830 = vmatprep.subr.bf16.mxu0 0
        %1831 = vmatpush2.bf16.msra.mxu0 0
        %1832 = vmatprep.subr.bf16.mxu0 0
        %1833 = vmatpush2.bf16.msra.mxu0 0
        %1834 = vmatprep.subr.bf16.mxu0 0
        %1835 = vmatpush2.bf16.msra.mxu0 0
        %1836 = vmatprep.subr.bf16.mxu0 0
        %1837 = vmatpush2.bf16.msra.mxu0 0
        %1838 = vmatprep.subr.bf16.mxu0 0
        %1839 = vmatpush2.bf16.msra.mxu0 0
        %1840 = vmatprep.subr.bf16.mxu0 0
        %1841 = vmatpush2.bf16.msra.mxu0 0
        %1842 = vmatprep.subr.bf16.mxu0 0
        %1843 = vmatpush2.bf16.msra.mxu0 0
        %1844 = vmatprep.subr.bf16.mxu0 0
        %1845 = vmatpush2.bf16.msra.mxu0 0
        %1846 = vmatprep.mubr.bf16.mxu0 0
        %1847 = vmatmul.mubr.bf16.gmra.mxu0 %v1809
        %v1848 = vpop.f32.mrf.mxu0
        %v1849 = vadd.f32 0.0, %v1848
        %v1850 = vpop.f32.mrf.mxu0
        %v1851 = vpop.f32.mrf.mxu0
        %v1852 = vpop.f32.mrf.mxu0
        %1853 = vdwg.mxu0
        %v1854 = vpack.c.bf16 %v1573, %v1527
        %v1855 = vpack.c.bf16 %v1665, %v1619
        %v1856 = vpack.c.bf16 %v1757, %v1711
        %v1857 = vpack.c.bf16 %v1849, %v1803
        %v1858 = vld [vmem:[%s378] sm:$0xf]
        %v1859 = vld [vmem:[%s378 + $0x4] sm:$0xf]
        %v1860 = vld [vmem:[%s378 + $0x8] sm:$0xf]
        %v1861 = vld [vmem:[%s378 + $0xc] sm:$0xf]
        %v1863 = vsel %vm1020, %v1854, 0
        %v1866 = vsel %vm1488, %v1858, 0
        %1868 = vmatprep.subr.bf16.mxu0 0
        %1869 = vmatpush1.bf16.msra.mxu0 0
        %1870 = vmatprep.subr.bf16.mxu0 0
        %1871 = vmatpush1.bf16.msra.mxu0 0
        %1872 = vmatprep.subr.bf16.mxu0 0
        %1873 = vmatpush1.bf16.msra.mxu0 0
        %1874 = vmatprep.subr.bf16.mxu0 0
        %1875 = vmatpush1.bf16.msra.mxu0 0
        %1876 = vmatprep.subr.bf16.mxu0 0
        %1877 = vmatpush1.bf16.msra.mxu0 0
        %1878 = vmatprep.subr.bf16.mxu0 0
        %1879 = vmatpush1.bf16.msra.mxu0 0
        %1880 = vmatprep.subr.bf16.mxu0 0
        %1881 = vmatpush1.bf16.msra.mxu0 0
        %1882 = vmatprep.subr.bf16.mxu0 0
        %1883 = vmatpush1.bf16.msra.mxu0 %v1866
        %1884 = vmatprep.subr.bf16.mxu0 0
        %1885 = vmatpush2.bf16.msra.mxu0 0
        %1886 = vmatprep.subr.bf16.mxu0 0
        %1887 = vmatpush2.bf16.msra.mxu0 0
        %1888 = vmatprep.subr.bf16.mxu0 0
        %1889 = vmatpush2.bf16.msra.mxu0 0
        %1890 = vmatprep.subr.bf16.mxu0 0
        %1891 = vmatpush2.bf16.msra.mxu0 0
        %1892 = vmatprep.subr.bf16.mxu0 0
        %1893 = vmatpush2.bf16.msra.mxu0 0
        %1894 = vmatprep.subr.bf16.mxu0 0
        %1895 = vmatpush2.bf16.msra.mxu0 0
        %1896 = vmatprep.subr.bf16.mxu0 0
        %1897 = vmatpush2.bf16.msra.mxu0 0
        %1898 = vmatprep.subr.bf16.mxu0 0
        %1899 = vmatpush2.bf16.msra.mxu0 0
        %1900 = vmatprep.mubr.bf16.mxu0 0
        %1901 = vmatmul.mubr.bf16.gmra.mxu0 %v1863
        %v1902 = vpop.f32.mrf.mxu0
        %v1903 = vadd.f32 0.0, %v1902
        %v1904 = vpop.f32.mrf.mxu0
        %v1905 = vpop.f32.mrf.mxu0
        %v1906 = vadd.f32 0.0, %v1905
        %v1907 = vpop.f32.mrf.mxu0
        %1908 = vdwg.mxu0
        %v1910 = vsel %vm1020, %v1855, 0
        %v1913 = vsel %vm1488, %v1859, 0
        %1915 = vmatprep.subr.bf16.mxu0 0
        %1916 = vmatpush1.bf16.msra.mxu0 0
        %1917 = vmatprep.subr.bf16.mxu0 0
        %1918 = vmatpush1.bf16.msra.mxu0 0
        %1919 = vmatprep.subr.bf16.mxu0 0
        %1920 = vmatpush1.bf16.msra.mxu0 0
        %1921 = vmatprep.subr.bf16.mxu0 0
        %1922 = vmatpush1.bf16.msra.mxu0 0
        %1923 = vmatprep.subr.bf16.mxu0 0
        %1924 = vmatpush1.bf16.msra.mxu0 0
        %1925 = vmatprep.subr.bf16.mxu0 0
        %1926 = vmatpush1.bf16.msra.mxu0 0
        %1927 = vmatprep.subr.bf16.mxu0 0
        %1928 = vmatpush1.bf16.msra.mxu0 0
        %1929 = vmatprep.subr.bf16.mxu0 0
        %1930 = vmatpush1.bf16.msra.mxu0 %v1913
        %1931 = vmatprep.subr.bf16.mxu0 0
        %1932 = vmatpush2.bf16.msra.mxu0 0
        %1933 = vmatprep.subr.bf16.mxu0 0
        %1934 = vmatpush2.bf16.msra.mxu0 0
        %1935 = vmatprep.subr.bf16.mxu0 0
        %1936 = vmatpush2.bf16.msra.mxu0 0
        %1937 = vmatprep.subr.bf16.mxu0 0
        %1938 = vmatpush2.bf16.msra.mxu0 0
        %1939 = vmatprep.subr.bf16.mxu0 0
        %1940 = vmatpush2.bf16.msra.mxu0 0
        %1941 = vmatprep.subr.bf16.mxu0 0
        %1942 = vmatpush2.bf16.msra.mxu0 0
        %1943 = vmatprep.subr.bf16.mxu0 0
        %1944 = vmatpush2.bf16.msra.mxu0 0
        %1945 = vmatprep.subr.bf16.mxu0 0
        %1946 = vmatpush2.bf16.msra.mxu0 0
        %1947 = vmatprep.mubr.bf16.mxu0 0
        %1948 = vmatmul.mubr.bf16.gmra.mxu0 %v1910
        %v1949 = vpop.f32.mrf.mxu0
        %v1950 = vadd.f32 0.0, %v1949
        %v1951 = vpop.f32.mrf.mxu0
        %v1952 = vpop.f32.mrf.mxu0
        %v1953 = vadd.f32 0.0, %v1952
        %v1954 = vpop.f32.mrf.mxu0
        %1955 = vdwg.mxu0
        %v1957 = vsel %vm1020, %v1856, 0
        %v1960 = vsel %vm1488, %v1860, 0
        %1962 = vmatprep.subr.bf16.mxu0 0
        %1963 = vmatpush1.bf16.msra.mxu0 0
        %1964 = vmatprep.subr.bf16.mxu0 0
        %1965 = vmatpush1.bf16.msra.mxu0 0
        %1966 = vmatprep.subr.bf16.mxu0 0
        %1967 = vmatpush1.bf16.msra.mxu0 0
        %1968 = vmatprep.subr.bf16.mxu0 0
        %1969 = vmatpush1.bf16.msra.mxu0 0
        %1970 = vmatprep.subr.bf16.mxu0 0
        %1971 = vmatpush1.bf16.msra.mxu0 0
        %1972 = vmatprep.subr.bf16.mxu0 0
        %1973 = vmatpush1.bf16.msra.mxu0 0
        %1974 = vmatprep.subr.bf16.mxu0 0
        %1975 = vmatpush1.bf16.msra.mxu0 0
        %1976 = vmatprep.subr.bf16.mxu0 0
        %1977 = vmatpush1.bf16.msra.mxu0 %v1960
        %1978 = vmatprep.subr.bf16.mxu0 0
        %1979 = vmatpush2.bf16.msra.mxu0 0
        %1980 = vmatprep.subr.bf16.mxu0 0
        %1981 = vmatpush2.bf16.msra.mxu0 0
        %1982 = vmatprep.subr.bf16.mxu0 0
        %1983 = vmatpush2.bf16.msra.mxu0 0
        %1984 = vmatprep.subr.bf16.mxu0 0
        %1985 = vmatpush2.bf16.msra.mxu0 0
        %1986 = vmatprep.subr.bf16.mxu0 0
        %1987 = vmatpush2.bf16.msra.mxu0 0
        %1988 = vmatprep.subr.bf16.mxu0 0
        %1989 = vmatpush2.bf16.msra.mxu0 0
        %1990 = vmatprep.subr.bf16.mxu0 0
        %1991 = vmatpush2.bf16.msra.mxu0 0
        %1992 = vmatprep.subr.bf16.mxu0 0
        %1993 = vmatpush2.bf16.msra.mxu0 0
        %1994 = vmatprep.mubr.bf16.mxu0 0
        %1995 = vmatmul.mubr.bf16.gmra.mxu0 %v1957
        %v1996 = vpop.f32.mrf.mxu0
        %v1997 = vadd.f32 0.0, %v1996
        %v1998 = vpop.f32.mrf.mxu0
        %v1999 = vpop.f32.mrf.mxu0
        %v2000 = vadd.f32 0.0, %v1999
        %v2001 = vpop.f32.mrf.mxu0
        %2002 = vdwg.mxu0
        %v2004 = vsel %vm1020, %v1857, 0
        %v2007 = vsel %vm1488, %v1861, 0
        %2009 = vmatprep.subr.bf16.mxu0 0
        %2010 = vmatpush1.bf16.msra.mxu0 0
        %2011 = vmatprep.subr.bf16.mxu0 0
        %2012 = vmatpush1.bf16.msra.mxu0 0
        %2013 = vmatprep.subr.bf16.mxu0 0
        %2014 = vmatpush1.bf16.msra.mxu0 0
        %2015 = vmatprep.subr.bf16.mxu0 0
        %2016 = vmatpush1.bf16.msra.mxu0 0
        %2017 = vmatprep.subr.bf16.mxu0 0
        %2018 = vmatpush1.bf16.msra.mxu0 0
        %2019 = vmatprep.subr.bf16.mxu0 0
        %2020 = vmatpush1.bf16.msra.mxu0 0
        %2021 = vmatprep.subr.bf16.mxu0 0
        %2022 = vmatpush1.bf16.msra.mxu0 0
        %2023 = vmatprep.subr.bf16.mxu0 0
        %2024 = vmatpush1.bf16.msra.mxu0 %v2007
        %2025 = vmatprep.subr.bf16.mxu0 0
        %2026 = vmatpush2.bf16.msra.mxu0 0
        %2027 = vmatprep.subr.bf16.mxu0 0
        %2028 = vmatpush2.bf16.msra.mxu0 0
        %2029 = vmatprep.subr.bf16.mxu0 0
        %2030 = vmatpush2.bf16.msra.mxu0 0
        %2031 = vmatprep.subr.bf16.mxu0 0
        %2032 = vmatpush2.bf16.msra.mxu0 0
        %2033 = vmatprep.subr.bf16.mxu0 0
        %2034 = vmatpush2.bf16.msra.mxu0 0
        %2035 = vmatprep.subr.bf16.mxu0 0
        %2036 = vmatpush2.bf16.msra.mxu0 0
        %2037 = vmatprep.subr.bf16.mxu0 0
        %2038 = vmatpush2.bf16.msra.mxu0 0
        %2039 = vmatprep.subr.bf16.mxu0 0
        %2040 = vmatpush2.bf16.msra.mxu0 0
        %2041 = vmatprep.mubr.bf16.mxu0 0
        %2042 = vmatmul.mubr.bf16.gmra.mxu0 %v2004
        %v2043 = vpop.f32.mrf.mxu0
        %v2044 = vadd.f32 0.0, %v2043
        %v2045 = vpop.f32.mrf.mxu0
        %v2046 = vpop.f32.mrf.mxu0
        %v2047 = vadd.f32 0.0, %v2046
        %v2048 = vpop.f32.mrf.mxu0
        %2049 = vdwg.mxu0
        %v2050 = vsel %vm409, %v1903, 0.0
        %v2051 = vsel %vm409, %v1950, 0.0
        %v2052 = vadd.f32 %v2050, %v2051
        %v2053 = vsel %vm409, %v1997, 0.0
        %v2054 = vadd.f32 %v2052, %v2053
        %v2055 = vsel %vm409, %v2044, 0.0
        %v2056 = vadd.f32 %v2054, %v2055
        %v2057 = vsel %vm409, %v1906, 0.0
        %v2058 = vsel %vm409, %v1953, 0.0
        %v2059 = vadd.f32 %v2057, %v2058
        %v2060 = vsel %vm409, %v2000, 0.0
        %v2061 = vadd.f32 %v2059, %v2060
        %v2062 = vsel %vm409, %v2047, 0.0
        %v2063 = vadd.f32 %v2061, %v2062
        %v2064 = vadd.f32 %v403, %v2056
        %v2065 = vadd.f32 %v404, %v2063
        %v2066 = vmul.f32 %v2064, %v2064
        %v2067 = vmul.f32 %v2065, %v2065
        %v2068 = vsel %vm409, %v2066, 0.0
        %2069 = vadd.xlane.f32.xlu0 %v2068
        %v2070 = vpop.xlane.xlu0 %2069
        %v2071 = vsel %vm409, %v2067, 0.0
        %2072 = vadd.xlane.f32.xlu0 %v2071
        %v2073 = vpop.xlane.xlu0 %2072
        %v2074 = vmul.f32 %v2070, %v416
        %v2075 = vmul.f32 %v2073, %v416
        %v2076 = vadd.f32 %v2074, 1e-06
        %v2077 = vadd.f32 %v2075, 1e-06
        %v2078 = vrsqrt.pop %v2076
        %v2079 = vrsqrt.pop %v2077
        %v2080 = vmul.f32 %v2064, %v2078
        %v2081 = vmul.f32 %v2065, %v2079
        %v2083 = vlaneseq
        %v2084 = vshrl.u32 %v2083, 7
        %v2085 = vsub.s32 0, %v2084
        %v2086 = vrot.slane %v406, %v2085
        %v2088 = vmul.f32 %v2080, %v2086
        %v2089 = vmul.f32 %v2081, %v2086
        %v2090 = vpack.c.bf16 %v2089, %v2088
        %v2091 = vld [vmem:[%s386] sm:$0xf]
        %v2092 = vld [vmem:[%s386 + $0x4] sm:$0xf]
        %v2093 = vld [vmem:[%s386 + $0x8] sm:$0xf]
        %v2094 = vld [vmem:[%s386 + $0xc] sm:$0xf]
        %v2099 = vunpack.c.l.b16 %v2091
        %v2100 = vunpack.c.l.b16 %v2092
        %v2101 = vunpack.c.l.b16 %v2093
        %v2102 = vunpack.c.l.b16 %v2094
        %v2103 = vpack.c.b16 %v2100, %v2099
        %v2104 = vpack.c.b16 %v2102, %v2101
        %v2108 = vsel %vm409, %v2090, 0
        %2110 = vmatprep.subr.bf16.mxu0 0
        %2111 = vmatpush1.bf16.msra.mxu0 0
        %2112 = vmatprep.subr.bf16.mxu0 0
        %2113 = vmatpush1.bf16.msra.mxu0 0
        %2114 = vmatprep.subr.bf16.mxu0 0
        %2115 = vmatpush1.bf16.msra.mxu0 0
        %2116 = vmatprep.subr.bf16.mxu0 0
        %2117 = vmatpush1.bf16.msra.mxu0 0
        %2118 = vmatprep.subr.bf16.mxu0 0
        %2119 = vmatpush1.bf16.msra.mxu0 0
        %2120 = vmatprep.subr.bf16.mxu0 0
        %2121 = vmatpush1.bf16.msra.mxu0 0
        %2122 = vmatprep.subr.bf16.mxu0 0
        %2123 = vmatpush1.bf16.msra.mxu0 %v2104
        %2124 = vmatprep.subr.bf16.mxu0 0
        %2125 = vmatpush1.bf16.msra.mxu0 %v2103
        %2126 = vmatprep.subr.bf16.mxu0 0
        %2127 = vmatpush2.bf16.msra.mxu0 0
        %2128 = vmatprep.subr.bf16.mxu0 0
        %2129 = vmatpush2.bf16.msra.mxu0 0
        %2130 = vmatprep.subr.bf16.mxu0 0
        %2131 = vmatpush2.bf16.msra.mxu0 0
        %2132 = vmatprep.subr.bf16.mxu0 0
        %2133 = vmatpush2.bf16.msra.mxu0 0
        %2134 = vmatprep.subr.bf16.mxu0 0
        %2135 = vmatpush2.bf16.msra.mxu0 0
        %2136 = vmatprep.subr.bf16.mxu0 0
        %2137 = vmatpush2.bf16.msra.mxu0 0
        %2138 = vmatprep.subr.bf16.mxu0 0
        %2139 = vmatpush2.bf16.msra.mxu0 0
        %2140 = vmatprep.subr.bf16.mxu0 0
        %2141 = vmatpush2.bf16.msra.mxu0 0
        %2142 = vmatprep.mubr.bf16.mxu0 0
        %2143 = vmatmul.mubr.bf16.gmra.mxu0 %v2108
        %v2144 = vpop.f32.mrf.mxu0
        %v2145 = vadd.f32 0.0, %v2144
        %v2146 = vpop.f32.mrf.mxu0
        %v2147 = vpop.f32.mrf.mxu0
        %v2148 = vadd.f32 0.0, %v2147
        %v2149 = vpop.f32.mrf.mxu0
        %2150 = vdwg.mxu0
        %v2151 = vxor.u32 %v2145, 2147483648
        %v2152 = vxor.u32 %v2148, 2147483648
        %v2153 = vmul.f32 %v2151, 1.442695
        %v2154 = vpow.pop %v2153
        %v2155 = vmul.f32 %v2152, 1.442695
        %v2156 = vpow.pop %v2155
        %v2157 = vadd.f32 %v2154, 1.0
        %v2158 = vadd.f32 %v2156, 1.0
        %v2159 = vrcp.pop %v2157
        %v2160 = vmul.f32 1.0, %v2159
        %v2161 = vrcp.pop %v2158
        %v2162 = vmul.f32 1.0, %v2161
        %v2163 = vmul.f32 %v2145, %v2160
        %v2164 = vmul.f32 %v2148, %v2162
        %v2165 = vpack.c.bf16 %v2164, %v2163
        %v2166 = vld [vmem:[%s391] sm:$0xf]
        %v2167 = vld [vmem:[%s391 + $0x4] sm:$0xf]
        %v2168 = vld [vmem:[%s391 + $0x8] sm:$0xf]
        %v2169 = vld [vmem:[%s391 + $0xc] sm:$0xf]
        %v2170 = vld [vmem:[%s391 + $0x10] sm:$0xf]
        %v2171 = vld [vmem:[%s391 + $0x14] sm:$0xf]
        %v2172 = vld [vmem:[%s391 + $0x18] sm:$0xf]
        %v2173 = vld [vmem:[%s391 + $0x1c] sm:$0xf]
        %v2174 = vld [vmem:[%s391 + $0x20] sm:$0xf]
        %v2175 = vld [vmem:[%s391 + $0x24] sm:$0xf]
        %v2176 = vld [vmem:[%s391 + $0x28] sm:$0xf]
        %v2177 = vld [vmem:[%s391 + $0x2c] sm:$0xf]
        %v2178 = vld [vmem:[%s391 + $0x30] sm:$0xf]
        %v2179 = vld [vmem:[%s391 + $0x34] sm:$0xf]
        %v2180 = vld [vmem:[%s391 + $0x38] sm:$0xf]
        %v2181 = vld [vmem:[%s391 + $0x3c] sm:$0xf]
        %v2198 = vunpack.c.l.b16 %v2166
        %v2199 = vunpack.c.l.b16 %v2167
        %v2200 = vunpack.c.l.b16 %v2168
        %v2201 = vunpack.c.l.b16 %v2169
        %v2202 = vunpack.c.l.b16 %v2170
        %v2203 = vunpack.c.l.b16 %v2171
        %v2204 = vunpack.c.l.b16 %v2172
        %v2205 = vunpack.c.l.b16 %v2173
        %v2206 = vunpack.c.l.b16 %v2174
        %v2207 = vunpack.c.l.b16 %v2175
        %v2208 = vunpack.c.l.b16 %v2176
        %v2209 = vunpack.c.l.b16 %v2177
        %v2210 = vunpack.c.l.b16 %v2178
        %v2211 = vunpack.c.l.b16 %v2179
        %v2212 = vunpack.c.l.b16 %v2180
        %v2213 = vunpack.c.l.b16 %v2181
        %v2214 = vpack.c.b16 %v2199, %v2198
        %v2215 = vpack.c.b16 %v2201, %v2200
        %v2216 = vpack.c.b16 %v2203, %v2202
        %v2217 = vpack.c.b16 %v2205, %v2204
        %v2218 = vpack.c.b16 %v2207, %v2206
        %v2219 = vpack.c.b16 %v2209, %v2208
        %v2220 = vpack.c.b16 %v2211, %v2210
        %v2221 = vpack.c.b16 %v2213, %v2212
        %2230 = vmatprep.subr.bf16.mxu0 0
        %2231 = vmatpush1.bf16.msra.mxu0 %v2221
        %2232 = vmatprep.subr.bf16.mxu0 0
        %2233 = vmatpush1.bf16.msra.mxu0 %v2220
        %2234 = vmatprep.subr.bf16.mxu0 0
        %2235 = vmatpush1.bf16.msra.mxu0 %v2219
        %2236 = vmatprep.subr.bf16.mxu0 0
        %2237 = vmatpush1.bf16.msra.mxu0 %v2218
        %2238 = vmatprep.subr.bf16.mxu0 0
        %2239 = vmatpush1.bf16.msra.mxu0 %v2217
        %2240 = vmatprep.subr.bf16.mxu0 0
        %2241 = vmatpush1.bf16.msra.mxu0 %v2216
        %2242 = vmatprep.subr.bf16.mxu0 0
        %2243 = vmatpush1.bf16.msra.mxu0 %v2215
        %2244 = vmatprep.subr.bf16.mxu0 0
        %2245 = vmatpush1.bf16.msra.mxu0 %v2214
        %2246 = vmatprep.subr.bf16.mxu0 0
        %2247 = vmatpush2.bf16.msra.mxu0 0
        %2248 = vmatprep.subr.bf16.mxu0 0
        %2249 = vmatpush2.bf16.msra.mxu0 0
        %2250 = vmatprep.subr.bf16.mxu0 0
        %2251 = vmatpush2.bf16.msra.mxu0 0
        %2252 = vmatprep.subr.bf16.mxu0 0
        %2253 = vmatpush2.bf16.msra.mxu0 0
        %2254 = vmatprep.subr.bf16.mxu0 0
        %2255 = vmatpush2.bf16.msra.mxu0 0
        %2256 = vmatprep.subr.bf16.mxu0 0
        %2257 = vmatpush2.bf16.msra.mxu0 0
        %2258 = vmatprep.subr.bf16.mxu0 0
        %2259 = vmatpush2.bf16.msra.mxu0 0
        %2260 = vmatprep.subr.bf16.mxu0 0
        %2261 = vmatpush2.bf16.msra.mxu0 0
        %2262 = vmatprep.mubr.bf16.mxu0 0
        %2263 = vmatmul.mubr.bf16.gmra.mxu0 %v2165
        %v2264 = vpop.f32.mrf.mxu0
        %v2265 = vadd.f32 0.0, %v2264
        %v2266 = vpop.f32.mrf.mxu0
        %v2267 = vpop.f32.mrf.mxu0
        %v2268 = vadd.f32 0.0, %v2267
        %v2269 = vpop.f32.mrf.mxu0
        %2270 = vdwg.mxu0
        %v2271 = vadd.f32 %v2064, %v2265
        %v2272 = vadd.f32 %v2065, %v2268
        %2273 = vst.msk [vmem:[#allocation2] sm:$0xff] %vm409, %v2271
        %2274 = vst.msk [vmem:[#allocation2 + $0x8] sm:$0xff] %vm409, %v2272
        // Predicated region
        $region53: #{tpu_custom_call.1} parent=47 // pred_check
          %p2275 = pneg %p231
        $region54: #{tpu_custom_call.1} parent=47 // pred_check_branch
          %2277 = sbr.rel (%p2275) target = $region56
        $region55: #{tpu_custom_call.1} parent=47 // pred_region
          %s2278 = smul.u32 2, %s23
          %s2280 = ssub.s32 256, 256
          %2281 = vsyncadd [#allocation3], %s2280
          %s2282 = smul.addr %s2278, 128
          %s2283 = scalar_lea.hbm %s7, %s2282
          %s2284 = sshll.u32 [#allocation2], 4
          %s2285 = int_to_ptr.vmem [resolvable:$true] %s2284
          %2290 = dma.vmem_to_hbm [thread:$0]  %s2285, 256, %s2283, [#allocation3], 128, 128, 8
        $region56: #{tpu_custom_call.1} parent=47 // pred_fallthru
          _
        // Predicated region
        $region57: #{tpu_custom_call.1} parent=47 // pred_check
          %p2291 = pneg %p231
        $region58: #{tpu_custom_call.1} parent=47 // pred_check_branch
          %2293 = sbr.rel (%p2291) target = $region60
        $region59: #{tpu_custom_call.1} parent=47 // pred_region
          %2294 = dma.done [#allocation3], 256
        $region60: #{tpu_custom_call.1} parent=47 // pred_fallthru
          _
      $region48: #{tpu_custom_call.1} parent=5 // pred_fallthru
        _
      %p2295 = scmp.le.s32.totalorder 2, %s14
      // Predicated region
      $region61: #{tpu_custom_call.1} parent=5 // pred_check
        %p2296 = pneg %p2295
      $region62: #{tpu_custom_call.1} parent=5 // pred_check_branch
        %2298 = sbr.rel (%p2296) target = $region64
      $region63: #{tpu_custom_call.1} parent=5 // pred_region
        %s2299 = ssub.s32 %s14, 2
      $region64: #{tpu_custom_call.1} parent=5 // pred_fallthru
        _
    $region6: #{tpu_custom_call.1} parent=1 // loop_footer
      %s18 = sadd.s32 1, %s14
    $region7: #{tpu_custom_call.1} parent=1 // loop_footer_branch
      %13 = sbr.rel target = $region3
    $region8: #{tpu_custom_call.1} parent=1 // loop_exit
      _
    %2300 = vsyncpa [#allocation3], 1
    %s2301 = scalar_lea.sflag [#allocation3], 1
    %2302 = vsyncpa %s2301, 1

</llo_original>
